<compile_context>
chip_gen: v6e
topology: v6e:2x2x1
jax: 0.10.0
libtpu: 0.0.40
codegen_flags: <defaults>
</compile_context>

<pallas_src>
import functools

import jax
import jax.numpy as jnp
from jax.experimental import pallas as pl
from jax.experimental.pallas import tpu as pltpu

LANE = 128


def _fused_backbone_head_kernel(x_ref, w_ref, b_ref, wh_ref, bh_ref, o_ref, *,
                                H, W, K, Cin, inv_hw):
    """One grid step == one image.

    x_ref : [1, H+K-1, W+K-1, Cin]   padded NHWC image (f32)
    w_ref : [K*K, Cin, Cout_p]       conv weight, lane-padded (bf16)
    b_ref : [1, Cout_p]              conv bias (f32)
    wh_ref: [Cout_p, Cls_p]          head weight, pre-transposed + padded (bf16)
    bh_ref: [1, Cls_p]               head bias (f32)
    o_ref : [1, 1, Cls_p]            logits for this image (f32)
    """
    cout_p = w_ref.shape[-1]
    xb = x_ref[0]                                    # [H+K-1, W+K-1, Cin] in VMEM

    # Convolution as K*K accumulated matmuls over shifted slices of the VMEM
    # tile (no im2col materialized in HBM).  f32 accumulator on the MXU.
    acc = jnp.zeros((H * W, cout_p), jnp.float32)
    for ky in range(K):
        for kx in range(K):
            xs = xb[ky:ky + H, kx:kx + W, :].reshape(H * W, Cin)
            acc = acc + jnp.dot(xs.astype(jnp.bfloat16), w_ref[ky * K + kx],
                                preferred_element_type=jnp.float32)

    # Bias + ReLU epilogue in f32 (v5e has no bf16 VPU path).
    feat = jnp.maximum(acc + b_ref[...], 0.0)        # [H*W, Cout_p]

    # Head matmul on the MXU, then GAP as one cheap reduction
    # (Linear and mean commute, so no separate mem-bound GAP kernel).
    z = jnp.dot(feat.astype(jnp.bfloat16), wh_ref[...],
                preferred_element_type=jnp.float32)   # [H*W, Cls_p]
    logits = jnp.sum(z, axis=0, keepdims=True) * inv_hw + bh_ref[...]
    o_ref[...] = logits[None]                         # lane-dense [1, 1, Cls_p]


def _pad_to(n, mult):
    return ((n + mult - 1) // mult) * mult


def classifier_forward(x_nchw, conv_w, conv_b, head_w, head_b):
    N, Cin, H, W = x_nchw.shape
    Cout = conv_w.shape[0]
    K = conv_w.shape[2]
    class_num = head_w.shape[0]
    pad = K // 2                      # 'same' padding (odd K only)
    Hp, Wp = H + 2 * pad, W + 2 * pad

    cout_p = _pad_to(Cout, LANE)
    cls_p = _pad_to(class_num, LANE)

    # NCHW -> NHWC + tiny spatial zero-pad (no K*K patch blow-up in HBM).
    x = jnp.transpose(x_nchw, (0, 2, 3, 1)).astype(jnp.float32)
    xp = jnp.pad(x, ((0, 0), (pad, pad), (pad, pad), (0, 0)))

    # Conv weight [Cout, Cin, K, K] -> [K*K, Cin, Cout_p]  (bf16, lane-padded).
    w3 = jnp.transpose(conv_w, (2, 3, 1, 0)).reshape(K * K, Cin, Cout)
    w3 = (jnp.zeros((K * K, Cin, cout_p), jnp.bfloat16)
          .at[:, :, :Cout].set(w3.astype(jnp.bfloat16)))
    b_row = (jnp.zeros((1, cout_p), jnp.float32)
             .at[:, :Cout].set(conv_b.astype(jnp.float32)))

    # Head weight pre-transposed to [Cout_p, Cls_p] (bf16); bias [1, Cls_p].
    wh = (jnp.zeros((cout_p, cls_p), jnp.bfloat16)
          .at[:Cout, :class_num].set(head_w.T.astype(jnp.bfloat16)))
    bh = (jnp.zeros((1, cls_p), jnp.float32)
          .at[:, :class_num].set(head_b.astype(jnp.float32)))

    kernel = functools.partial(_fused_backbone_head_kernel,
                               H=H, W=W, K=K, Cin=Cin, inv_hw=1.0 / (H * W))

    # TODO(synk): for realistic image sizes, add a second ("arbitrary") grid
    # axis tiling H with a halo'd input window and a VMEM GAP accumulator.
    out = pl.pallas_call(
        kernel,
        out_shape=jax.ShapeDtypeStruct((N, 1, cls_p), jnp.float32),
        grid=(N,),
        in_specs=[
            pl.BlockSpec((1, Hp, Wp, Cin), lambda n: (n, 0, 0, 0)),
            pl.BlockSpec((K * K, Cin, cout_p), lambda n: (0, 0, 0)),
            pl.BlockSpec((1, cout_p), lambda n: (0, 0)),
            pl.BlockSpec((cout_p, cls_p), lambda n: (0, 0)),
            pl.BlockSpec((1, cls_p), lambda n: (0, 0)),
        ],
        out_specs=pl.BlockSpec((1, 1, cls_p), lambda n: (n, 0, 0)),
        compiler_params=pltpu.CompilerParams(
            dimension_semantics=("parallel",),
            vmem_limit_bytes=32 * 1024 * 1024,
        ),
    )(xp, w3, b_row, wh, bh)

    return out[:, 0, :class_num]


def _reference_forward(x_nchw, conv_w, conv_b, head_w, head_b):
    y = jax.lax.conv_general_dilated(
        x_nchw.astype(jnp.float32), conv_w.astype(jnp.float32),
        window_strides=(1, 1), padding="SAME",
        dimension_numbers=("NCHW", "OIHW", "NCHW"))
    y = jnp.maximum(y + conv_b[None, :, None, None], 0.0)
    g = jnp.mean(y, axis=(2, 3))
    return g @ head_w.T + head_b[None, :]


if __name__ == "__main__":
    key = jax.random.PRNGKey(0)
    N, Cin, H, W = 2, 4, 16, 16        # NCHW input (PyTorch convention)
    num_features = 32                  # backbone.num_features analogue
    class_num = 8
    K = 3

    k1, k2, k3, k4, k5 = jax.random.split(key, 5)
    x_nchw = jax.random.normal(k1, (N, Cin, H, W), jnp.float32)
    conv_w = jax.random.normal(k2, (num_features, Cin, K, K), jnp.float32) * 0.1
    conv_b = jax.random.normal(k3, (num_features,), jnp.float32) * 0.1
    head_w = jax.random.normal(k4, (class_num, num_features), jnp.float32) * 0.1
    head_b = jax.random.normal(k5, (class_num,), jnp.float32) * 0.1

    out = classifier_forward(x_nchw, conv_w, conv_b, head_w, head_b)
    out = jax.block_until_ready(out)
    assert out.shape == (N, class_num) and out.dtype == jnp.float32

    ref = _reference_forward(x_nchw, conv_w, conv_b, head_w, head_b)
    assert bool(jnp.allclose(out, ref, atol=3e-2, rtol=3e-2)), (
        f"max abs err {float(jnp.max(jnp.abs(out - ref)))}")
    print("KERNEL_OK")
</pallas_src>

<mosaic_0001>
module attributes {stable_mosaic.version = 11 : i64} {
  func.func @_fused_backbone_head_kernel(%arg0: i32, %arg1: memref<1x18x18x4xf32, #tpu.memory_space<vmem>>, %arg2: memref<9x4x128xbf16, #tpu.memory_space<vmem>>, %arg3: memref<1x128xf32, #tpu.memory_space<vmem>>, %arg4: memref<128x128xbf16, #tpu.memory_space<vmem>>, %arg5: memref<1x128xf32, #tpu.memory_space<vmem>>, %arg6: memref<1x1x128xf32, #tpu.memory_space<vmem>>) attributes {dimension_semantics = [#tpu.dimension_semantics<parallel>], iteration_bounds = array<i64: 2>, scalar_prefetch = 0 : i64, scratch_operands = 0 : i64, tpu.core_type = #tpu.core_type<tc>, window_params = [{transform_indices = @transform_0, window_bounds = array<i64: 1, 18, 18, 4>}, {pipeline_mode = #tpu.pipeline_mode<synchronous>, transform_indices = @transform_1, window_bounds = array<i64: 9, 4, 128>}, {pipeline_mode = #tpu.pipeline_mode<synchronous>, transform_indices = @transform_2, window_bounds = array<i64: 1, 128>}, {pipeline_mode = #tpu.pipeline_mode<synchronous>, transform_indices = @transform_3, window_bounds = array<i64: 128, 128>}, {pipeline_mode = #tpu.pipeline_mode<synchronous>, transform_indices = @transform_4, window_bounds = array<i64: 1, 128>}, {transform_indices = @transform_5, window_bounds = array<i64: 1, 1, 128>}]} {
    %c0 = arith.constant 0 : index
    %c0_0 = arith.constant 0 : index
    %c0_1 = arith.constant 0 : index
    %c0_2 = arith.constant 0 : index
    %0 = vector.load %arg1[%c0, %c0_0, %c0_1, %c0_2] : memref<1x18x18x4xf32, #tpu.memory_space<vmem>>, vector<1x18x18x4xf32>
    %1 = vector.shape_cast %0 : vector<1x18x18x4xf32> to vector<18x18x4xf32>
    %cst = arith.constant 0.000000e+00 : f32
    %2 = vector.broadcast %cst : f32 to vector<256x128xf32>
    %3 = vector.extract_strided_slice %1 {offsets = [0, 0, 0], sizes = [16, 16, 4], strides = [1, 1, 1]} : vector<18x18x4xf32> to vector<16x16x4xf32>
    %4 = vector.shape_cast %3 : vector<16x16x4xf32> to vector<256x4xf32>
    %5 = arith.truncf %4 : vector<256x4xf32> to vector<256x4xbf16>
    %c0_3 = arith.constant 0 : index
    %c0_4 = arith.constant 0 : index
    %c0_5 = arith.constant 0 : index
    %6 = vector.load %arg2[%c0_3, %c0_4, %c0_5] : memref<9x4x128xbf16, #tpu.memory_space<vmem>>, vector<1x4x128xbf16>
    %7 = vector.shape_cast %6 : vector<1x4x128xbf16> to vector<4x128xbf16>
    %cst_6 = arith.constant dense<0.000000e+00> : vector<256x128xf32>
    %8 = tpu.matmul %5, %7, %cst_6 {dimension_numbers = #tpu.dot_dimension_numbers<[1], [0], [0], [1], [0, 0, 1, 1], [], []>} : vector<256x4xbf16>, vector<4x128xbf16>, vector<256x128xf32> -> vector<256x128xf32>
    %9 = arith.addf %2, %8 : vector<256x128xf32>
    %10 = vector.extract_strided_slice %1 {offsets = [0, 1, 0], sizes = [16, 16, 4], strides = [1, 1, 1]} : vector<18x18x4xf32> to vector<16x16x4xf32>
    %11 = vector.shape_cast %10 : vector<16x16x4xf32> to vector<256x4xf32>
    %12 = arith.truncf %11 : vector<256x4xf32> to vector<256x4xbf16>
    %c1 = arith.constant 1 : index
    %c0_7 = arith.constant 0 : index
    %c0_8 = arith.constant 0 : index
    %13 = vector.load %arg2[%c1, %c0_7, %c0_8] : memref<9x4x128xbf16, #tpu.memory_space<vmem>>, vector<1x4x128xbf16>
    %14 = vector.shape_cast %13 : vector<1x4x128xbf16> to vector<4x128xbf16>
    %cst_9 = arith.constant dense<0.000000e+00> : vector<256x128xf32>
    %15 = tpu.matmul %12, %14, %cst_9 {dimension_numbers = #tpu.dot_dimension_numbers<[1], [0], [0], [1], [0, 0, 1, 1], [], []>} : vector<256x4xbf16>, vector<4x128xbf16>, vector<256x128xf32> -> vector<256x128xf32>
    %16 = arith.addf %9, %15 : vector<256x128xf32>
    %17 = vector.extract_strided_slice %1 {offsets = [0, 2, 0], sizes = [16, 16, 4], strides = [1, 1, 1]} : vector<18x18x4xf32> to vector<16x16x4xf32>
    %18 = vector.shape_cast %17 : vector<16x16x4xf32> to vector<256x4xf32>
    %19 = arith.truncf %18 : vector<256x4xf32> to vector<256x4xbf16>
    %c2 = arith.constant 2 : index
    %c0_10 = arith.constant 0 : index
    %c0_11 = arith.constant 0 : index
    %20 = vector.load %arg2[%c2, %c0_10, %c0_11] : memref<9x4x128xbf16, #tpu.memory_space<vmem>>, vector<1x4x128xbf16>
    %21 = vector.shape_cast %20 : vector<1x4x128xbf16> to vector<4x128xbf16>
    %cst_12 = arith.constant dense<0.000000e+00> : vector<256x128xf32>
    %22 = tpu.matmul %19, %21, %cst_12 {dimension_numbers = #tpu.dot_dimension_numbers<[1], [0], [0], [1], [0, 0, 1, 1], [], []>} : vector<256x4xbf16>, vector<4x128xbf16>, vector<256x128xf32> -> vector<256x128xf32>
    %23 = arith.addf %16, %22 : vector<256x128xf32>
    %24 = vector.extract_strided_slice %1 {offsets = [1, 0, 0], sizes = [16, 16, 4], strides = [1, 1, 1]} : vector<18x18x4xf32> to vector<16x16x4xf32>
    %25 = vector.shape_cast %24 : vector<16x16x4xf32> to vector<256x4xf32>
    %26 = arith.truncf %25 : vector<256x4xf32> to vector<256x4xbf16>
    %c3 = arith.constant 3 : index
    %c0_13 = arith.constant 0 : index
    %c0_14 = arith.constant 0 : index
    %27 = vector.load %arg2[%c3, %c0_13, %c0_14] : memref<9x4x128xbf16, #tpu.memory_space<vmem>>, vector<1x4x128xbf16>
    %28 = vector.shape_cast %27 : vector<1x4x128xbf16> to vector<4x128xbf16>
    %cst_15 = arith.constant dense<0.000000e+00> : vector<256x128xf32>
    %29 = tpu.matmul %26, %28, %cst_15 {dimension_numbers = #tpu.dot_dimension_numbers<[1], [0], [0], [1], [0, 0, 1, 1], [], []>} : vector<256x4xbf16>, vector<4x128xbf16>, vector<256x128xf32> -> vector<256x128xf32>
    %30 = arith.addf %23, %29 : vector<256x128xf32>
    %31 = vector.extract_strided_slice %1 {offsets = [1, 1, 0], sizes = [16, 16, 4], strides = [1, 1, 1]} : vector<18x18x4xf32> to vector<16x16x4xf32>
    %32 = vector.shape_cast %31 : vector<16x16x4xf32> to vector<256x4xf32>
    %33 = arith.truncf %32 : vector<256x4xf32> to vector<256x4xbf16>
    %c4 = arith.constant 4 : index
    %c0_16 = arith.constant 0 : index
    %c0_17 = arith.constant 0 : index
    %34 = vector.load %arg2[%c4, %c0_16, %c0_17] : memref<9x4x128xbf16, #tpu.memory_space<vmem>>, vector<1x4x128xbf16>
    %35 = vector.shape_cast %34 : vector<1x4x128xbf16> to vector<4x128xbf16>
    %cst_18 = arith.constant dense<0.000000e+00> : vector<256x128xf32>
    %36 = tpu.matmul %33, %35, %cst_18 {dimension_numbers = #tpu.dot_dimension_numbers<[1], [0], [0], [1], [0, 0, 1, 1], [], []>} : vector<256x4xbf16>, vector<4x128xbf16>, vector<256x128xf32> -> vector<256x128xf32>
    %37 = arith.addf %30, %36 : vector<256x128xf32>
    %38 = vector.extract_strided_slice %1 {offsets = [1, 2, 0], sizes = [16, 16, 4], strides = [1, 1, 1]} : vector<18x18x4xf32> to vector<16x16x4xf32>
    %39 = vector.shape_cast %38 : vector<16x16x4xf32> to vector<256x4xf32>
    %40 = arith.truncf %39 : vector<256x4xf32> to vector<256x4xbf16>
    %c5 = arith.constant 5 : index
    %c0_19 = arith.constant 0 : index
    %c0_20 = arith.constant 0 : index
    %41 = vector.load %arg2[%c5, %c0_19, %c0_20] : memref<9x4x128xbf16, #tpu.memory_space<vmem>>, vector<1x4x128xbf16>
    %42 = vector.shape_cast %41 : vector<1x4x128xbf16> to vector<4x128xbf16>
    %cst_21 = arith.constant dense<0.000000e+00> : vector<256x128xf32>
    %43 = tpu.matmul %40, %42, %cst_21 {dimension_numbers = #tpu.dot_dimension_numbers<[1], [0], [0], [1], [0, 0, 1, 1], [], []>} : vector<256x4xbf16>, vector<4x128xbf16>, vector<256x128xf32> -> vector<256x128xf32>
    %44 = arith.addf %37, %43 : vector<256x128xf32>
    %45 = vector.extract_strided_slice %1 {offsets = [2, 0, 0], sizes = [16, 16, 4], strides = [1, 1, 1]} : vector<18x18x4xf32> to vector<16x16x4xf32>
    %46 = vector.shape_cast %45 : vector<16x16x4xf32> to vector<256x4xf32>
    %47 = arith.truncf %46 : vector<256x4xf32> to vector<256x4xbf16>
    %c6 = arith.constant 6 : index
    %c0_22 = arith.constant 0 : index
    %c0_23 = arith.constant 0 : index
    %48 = vector.load %arg2[%c6, %c0_22, %c0_23] : memref<9x4x128xbf16, #tpu.memory_space<vmem>>, vector<1x4x128xbf16>
    %49 = vector.shape_cast %48 : vector<1x4x128xbf16> to vector<4x128xbf16>
    %cst_24 = arith.constant dense<0.000000e+00> : vector<256x128xf32>
    %50 = tpu.matmul %47, %49, %cst_24 {dimension_numbers = #tpu.dot_dimension_numbers<[1], [0], [0], [1], [0, 0, 1, 1], [], []>} : vector<256x4xbf16>, vector<4x128xbf16>, vector<256x128xf32> -> vector<256x128xf32>
    %51 = arith.addf %44, %50 : vector<256x128xf32>
    %52 = vector.extract_strided_slice %1 {offsets = [2, 1, 0], sizes = [16, 16, 4], strides = [1, 1, 1]} : vector<18x18x4xf32> to vector<16x16x4xf32>
    %53 = vector.shape_cast %52 : vector<16x16x4xf32> to vector<256x4xf32>
    %54 = arith.truncf %53 : vector<256x4xf32> to vector<256x4xbf16>
    %c7 = arith.constant 7 : index
    %c0_25 = arith.constant 0 : index
    %c0_26 = arith.constant 0 : index
    %55 = vector.load %arg2[%c7, %c0_25, %c0_26] : memref<9x4x128xbf16, #tpu.memory_space<vmem>>, vector<1x4x128xbf16>
    %56 = vector.shape_cast %55 : vector<1x4x128xbf16> to vector<4x128xbf16>
    %cst_27 = arith.constant dense<0.000000e+00> : vector<256x128xf32>
    %57 = tpu.matmul %54, %56, %cst_27 {dimension_numbers = #tpu.dot_dimension_numbers<[1], [0], [0], [1], [0, 0, 1, 1], [], []>} : vector<256x4xbf16>, vector<4x128xbf16>, vector<256x128xf32> -> vector<256x128xf32>
    %58 = arith.addf %51, %57 : vector<256x128xf32>
    %59 = vector.extract_strided_slice %1 {offsets = [2, 2, 0], sizes = [16, 16, 4], strides = [1, 1, 1]} : vector<18x18x4xf32> to vector<16x16x4xf32>
    %60 = vector.shape_cast %59 : vector<16x16x4xf32> to vector<256x4xf32>
    %61 = arith.truncf %60 : vector<256x4xf32> to vector<256x4xbf16>
    %c8 = arith.constant 8 : index
    %c0_28 = arith.constant 0 : index
    %c0_29 = arith.constant 0 : index
    %62 = vector.load %arg2[%c8, %c0_28, %c0_29] : memref<9x4x128xbf16, #tpu.memory_space<vmem>>, vector<1x4x128xbf16>
    %63 = vector.shape_cast %62 : vector<1x4x128xbf16> to vector<4x128xbf16>
    %cst_30 = arith.constant dense<0.000000e+00> : vector<256x128xf32>
    %64 = tpu.matmul %61, %63, %cst_30 {dimension_numbers = #tpu.dot_dimension_numbers<[1], [0], [0], [1], [0, 0, 1, 1], [], []>} : vector<256x4xbf16>, vector<4x128xbf16>, vector<256x128xf32> -> vector<256x128xf32>
    %65 = arith.addf %58, %64 : vector<256x128xf32>
    %c0_31 = arith.constant 0 : index
    %c0_32 = arith.constant 0 : index
    %66 = vector.load %arg3[%c0_31, %c0_32] : memref<1x128xf32, #tpu.memory_space<vmem>>, vector<1x128xf32>
    %67 = vector.broadcast %66 : vector<1x128xf32> to vector<256x128xf32>
    %68 = arith.addf %65, %67 : vector<256x128xf32>
    %cst_33 = arith.constant 0.000000e+00 : f32
    %69 = vector.broadcast %cst_33 : f32 to vector<256x128xf32>
    %70 = arith.maximumf %68, %69 : vector<256x128xf32>
    %71 = arith.truncf %70 : vector<256x128xf32> to vector<256x128xbf16>
    %c0_34 = arith.constant 0 : index
    %c0_35 = arith.constant 0 : index
    %72 = vector.load %arg4[%c0_34, %c0_35] : memref<128x128xbf16, #tpu.memory_space<vmem>>, vector<128x128xbf16>
    %cst_36 = arith.constant dense<0.000000e+00> : vector<256x128xf32>
    %73 = tpu.matmul %71, %72, %cst_36 {dimension_numbers = #tpu.dot_dimension_numbers<[1], [0], [0], [1], [0, 0, 1, 1], [], []>} : vector<256x128xbf16>, vector<128x128xbf16>, vector<256x128xf32> -> vector<256x128xf32>
    %cst_37 = arith.constant dense<0.000000e+00> : vector<128xf32>
    %74 = vector.multi_reduction <add>, %73, %cst_37 [0] : vector<256x128xf32> to vector<128xf32>
    %75 = vector.shape_cast %74 : vector<128xf32> to vector<1x128xf32>
    %cst_38 = arith.constant 3.906250e-03 : f32
    %76 = vector.broadcast %cst_38 : f32 to vector<1x128xf32>
    %77 = arith.mulf %75, %76 : vector<1x128xf32>
    %c0_39 = arith.constant 0 : index
    %c0_40 = arith.constant 0 : index
    %78 = vector.load %arg5[%c0_39, %c0_40] : memref<1x128xf32, #tpu.memory_space<vmem>>, vector<1x128xf32>
    %79 = arith.addf %77, %78 : vector<1x128xf32>
    %80 = vector.shape_cast %79 : vector<1x128xf32> to vector<1x1x128xf32>
    %c0_41 = arith.constant 0 : index
    %c0_42 = arith.constant 0 : index
    %c0_43 = arith.constant 0 : index
    %81 = vector.load %arg6[%c0_41, %c0_42, %c0_43] : memref<1x1x128xf32, #tpu.memory_space<vmem>>, vector<1x1x128xf32>
    tpu.vector_store %arg6[%c0_41, %c0_42, %c0_43], %80 {strides = array<i32>} : memref<1x1x128xf32, #tpu.memory_space<vmem>>, vector<1x1x128xf32>,
    return
  }
  func.func @transform_0(%arg0: i32) -> (i32, i32, i32, i32) {
    %c0_i32 = arith.constant 0 : i32
    %c0_i32_0 = arith.constant 0 : i32
    %c0_i32_1 = arith.constant 0 : i32
    %c0_i32_2 = arith.constant 0 : i32
    return %arg0, %c0_i32, %c0_i32_0, %c0_i32_1 : i32, i32, i32, i32
  }
  func.func @transform_1(%arg0: i32) -> (i32, i32, i32) {
    %c0_i32 = arith.constant 0 : i32
    %c0_i32_0 = arith.constant 0 : i32
    %c0_i32_1 = arith.constant 0 : i32
    %c0_i32_2 = arith.constant 0 : i32
    return %c0_i32, %c0_i32_0, %c0_i32_1 : i32, i32, i32
  }
  func.func @transform_2(%arg0: i32) -> (i32, i32) {
    %c0_i32 = arith.constant 0 : i32
    %c0_i32_0 = arith.constant 0 : i32
    %c0_i32_1 = arith.constant 0 : i32
    return %c0_i32, %c0_i32_0 : i32, i32
  }
  func.func @transform_3(%arg0: i32) -> (i32, i32) {
    %c0_i32 = arith.constant 0 : i32
    %c0_i32_0 = arith.constant 0 : i32
    %c0_i32_1 = arith.constant 0 : i32
    return %c0_i32, %c0_i32_0 : i32, i32
  }
  func.func @transform_4(%arg0: i32) -> (i32, i32) {
    %c0_i32 = arith.constant 0 : i32
    %c0_i32_0 = arith.constant 0 : i32
    %c0_i32_1 = arith.constant 0 : i32
    return %c0_i32, %c0_i32_0 : i32, i32
  }
  func.func @transform_5(%arg0: i32) -> (i32, i32, i32) {
    %c0_i32 = arith.constant 0 : i32
    %c0_i32_0 = arith.constant 0 : i32
    %c0_i32_1 = arith.constant 0 : i32
    return %arg0, %c0_i32, %c0_i32_0 : i32, i32, i32
  }
}

</mosaic_0001>

<llo_original>
// kernel: tpu_custom_call.1
$region0: #{tpu_custom_call.1}
  #allocation0 [shape = 'u32[]', space=smem, size = 0x4, offset = 0x4, fixed_abs, tag = 'smem constant byte address 0x4 - core index']
  #allocation1 [shape = 'u32[144,128]{1,0:T(1,128)}', space=vmem, size = 0x12000, scoped, tag = 'internal scratch']
  %s0 = inlined_call_operand.vmem [shape: f32[2,18,18,4], index: 0, kind: input, shape index: {}]
  %s1 = inlined_call_operand.vmem [shape: bf16[9,4,128], index: 1, kind: input, shape index: {}]
  %s2 = inlined_call_operand.vmem [shape: f32[1,128], index: 2, kind: input, shape index: {}]
  %s3 = inlined_call_operand.vmem [shape: bf16[128,128], index: 3, kind: input, shape index: {}]
  %s4 = inlined_call_operand.vmem [shape: f32[1,128], index: 4, kind: input, shape index: {}]
  %s5 = inlined_call_operand.hbm [shape: f32[2,1,128], index: 5, kind: output, shape index: {}]
  %s6 = sld [smem:[#allocation0]]
  $region53: #{tpu_custom_call.1} parent=0
    _
  %s8 = ssub.s32 1, %s6
  %s9 = scalar_select 0, %s8, %s6
  $region1: #{tpu_custom_call.1} parent=0
    #allocation2 [shape = 'u8[1024]{0}', space=vmem, size = 0x400, scoped, tag = 'output window, operand 0']
    #allocation3 [shape = 's32[2]{0}', space=sflag, size = 0x8, scoped, tag = 'scoped memory for tpu_custom_call.1']
    %10 = vsyncpa [#allocation3], 0
    %s11 = scalar_lea.sflag [#allocation3], 1
    %12 = vsyncpa %s11, 0
    loop: start=0, step=1, limit=4
    $region2: #{tpu_custom_call.1} parent=1 // loop_pre_header
      _
    $region3: #{tpu_custom_call.1} parent=1 // loop_header
      %s14 = sphi 0, %s18
      %p15 = scmp.ge.s32.totalorder %s14, 4
      %s24 = sphi 0, %s26
      %s27 = sphi 0, %s24
      %s28 = sphi 0, %s27
      %s44 = sphi 0, %s28
      %s48 = sphi 0, %s48
      %s50 = sphi 0, %s48
      %s51 = sphi 0, %s50
      %s65 = sphi 0, %s51
      %s69 = sphi 0, %s69
      %s71 = sphi 0, %s69
      %s72 = sphi 0, %s71
      %s86 = sphi 0, %s72
      %s90 = sphi 0, %s90
      %s92 = sphi 0, %s90
      %s93 = sphi 0, %s92
      %s107 = sphi 0, %s93
      %s111 = sphi 0, %s111
      %s113 = sphi 0, %s111
      %s114 = sphi 0, %s113
      %s128 = sphi 0, %s114
      %s134 = sphi 0, %s136
      %s137 = sphi 0, %s134
      %s138 = sphi 0, %s137
      %s154 = sphi 0, %s138
    $region4: #{tpu_custom_call.1} parent=1 // loop_header_branch
      %17 = sbr.rel (%p15) target = $region8
    $region5: #{tpu_custom_call.1} parent=1 // loop_body
      %s19 = ssub.s32 %s14, 1
      %s20 = ssub.s32 %s14, 2
      %s21 = sadd.s32 %s14, 1
      %s22 = ssub.s32 %s14, %s21
      %p23 = scmp.eq.s32.totalorder %s22, 0
      %s25 = sadd.s32 %s24, 1
      %s26 = scalar_select %p23, %s24, %s25
      %p29 = pneg %p23
      %p30 = scmp.eq.s32.totalorder %s14, 1
      %p31 = por %p29, %p30
      %p32 = scmp.ne.s32.totalorder %s24, %s27
      %p33 = scmp.eq.s32.totalorder %s14, 0
      %p34 = por %p32, %p33
      %p35 = scmp.ne.s32.totalorder %s24, %s27
      %p36 = scmp.eq.s32.totalorder %s19, 1
      %p37 = por %p35, %p36
      %p38 = scmp.ne.s32.totalorder %s27, %s28
      %p39 = scmp.eq.s32.totalorder %s19, 0
      %p40 = por %p38, %p39
      %p41 = scmp.ne.s32.totalorder %s27, %s28
      %p42 = scmp.eq.s32.totalorder %s20, 1
      %p43 = por %p41, %p42
      %p45 = scmp.ne.s32.totalorder %s28, %s44
      %p46 = scmp.eq.s32.totalorder %s20, 0
      %p47 = por %p45, %p46
      %s49 = sadd.s32 %s48, 1
      %p52 = scmp.eq.s32.totalorder %s14, 1
      %p53 = scmp.ne.s32.totalorder %s48, %s50
      %p54 = scmp.eq.s32.totalorder %s14, 0
      %p55 = por %p53, %p54
      %p56 = scmp.ne.s32.totalorder %s48, %s50
      %p57 = scmp.eq.s32.totalorder %s19, 1
      %p58 = por %p56, %p57
      %p59 = scmp.ne.s32.totalorder %s50, %s51
      %p60 = scmp.eq.s32.totalorder %s19, 0
      %p61 = por %p59, %p60
      %p62 = scmp.ne.s32.totalorder %s50, %s51
      %p63 = scmp.eq.s32.totalorder %s20, 1
      %p64 = por %p62, %p63
      %p66 = scmp.ne.s32.totalorder %s51, %s65
      %p67 = scmp.eq.s32.totalorder %s20, 0
      %p68 = por %p66, %p67
      %s70 = sadd.s32 %s69, 1
      %p73 = scmp.eq.s32.totalorder %s14, 1
      %p74 = scmp.ne.s32.totalorder %s69, %s71
      %p75 = scmp.eq.s32.totalorder %s14, 0
      %p76 = por %p74, %p75
      %p77 = scmp.ne.s32.totalorder %s69, %s71
      %p78 = scmp.eq.s32.totalorder %s19, 1
      %p79 = por %p77, %p78
      %p80 = scmp.ne.s32.totalorder %s71, %s72
      %p81 = scmp.eq.s32.totalorder %s19, 0
      %p82 = por %p80, %p81
      %p83 = scmp.ne.s32.totalorder %s71, %s72
      %p84 = scmp.eq.s32.totalorder %s20, 1
      %p85 = por %p83, %p84
      %p87 = scmp.ne.s32.totalorder %s72, %s86
      %p88 = scmp.eq.s32.totalorder %s20, 0
      %p89 = por %p87, %p88
      %s91 = sadd.s32 %s90, 1
      %p94 = scmp.eq.s32.totalorder %s14, 1
      %p95 = scmp.ne.s32.totalorder %s90, %s92
      %p96 = scmp.eq.s32.totalorder %s14, 0
      %p97 = por %p95, %p96
      %p98 = scmp.ne.s32.totalorder %s90, %s92
      %p99 = scmp.eq.s32.totalorder %s19, 1
      %p100 = por %p98, %p99
      %p101 = scmp.ne.s32.totalorder %s92, %s93
      %p102 = scmp.eq.s32.totalorder %s19, 0
      %p103 = por %p101, %p102
      %p104 = scmp.ne.s32.totalorder %s92, %s93
      %p105 = scmp.eq.s32.totalorder %s20, 1
      %p106 = por %p104, %p105
      %p108 = scmp.ne.s32.totalorder %s93, %s107
      %p109 = scmp.eq.s32.totalorder %s20, 0
      %p110 = por %p108, %p109
      %s112 = sadd.s32 %s111, 1
      %p115 = scmp.eq.s32.totalorder %s14, 1
      %p116 = scmp.ne.s32.totalorder %s111, %s113
      %p117 = scmp.eq.s32.totalorder %s14, 0
      %p118 = por %p116, %p117
      %p119 = scmp.ne.s32.totalorder %s111, %s113
      %p120 = scmp.eq.s32.totalorder %s19, 1
      %p121 = por %p119, %p120
      %p122 = scmp.ne.s32.totalorder %s113, %s114
      %p123 = scmp.eq.s32.totalorder %s19, 0
      %p124 = por %p122, %p123
      %p125 = scmp.ne.s32.totalorder %s113, %s114
      %p126 = scmp.eq.s32.totalorder %s20, 1
      %p127 = por %p125, %p126
      %p129 = scmp.ne.s32.totalorder %s114, %s128
      %p130 = scmp.eq.s32.totalorder %s20, 0
      %p131 = por %p129, %p130
      %s132 = ssub.s32 %s14, %s21
      %p133 = scmp.eq.s32.totalorder %s132, 0
      %s135 = sadd.s32 %s134, 1
      %s136 = scalar_select %p133, %s134, %s135
      %p139 = pneg %p133
      %p140 = scmp.eq.s32.totalorder %s14, 1
      %p141 = por %p139, %p140
      %p142 = scmp.ne.s32.totalorder %s134, %s137
      %p143 = scmp.eq.s32.totalorder %s14, 0
      %p144 = por %p142, %p143
      %p145 = scmp.ne.s32.totalorder %s134, %s137
      %p146 = scmp.eq.s32.totalorder %s19, 1
      %p147 = por %p145, %p146
      %p148 = scmp.ne.s32.totalorder %s137, %s138
      %p149 = scmp.eq.s32.totalorder %s19, 0
      %p150 = por %p148, %p149
      %p151 = scmp.ne.s32.totalorder %s137, %s138
      %p152 = scmp.eq.s32.totalorder %s20, 1
      %p153 = por %p151, %p152
      %p155 = scmp.ne.s32.totalorder %s138, %s154
      %p156 = scmp.eq.s32.totalorder %s20, 0
      %p157 = por %p155, %p156
      %p158 = scmp.le.s32.totalorder 1, %s14
      %p159 = scmp.lt.s32.totalorder %s14, 3
      %p160 = pnand %p158, %p159
      %p161 = pneg %p160
      // Predicated region
      $region9: #{tpu_custom_call.1} parent=5 // pred_check
        _
      $region10: #{tpu_custom_call.1} parent=5 // pred_check_branch
        %163 = sbr.rel (%p160) target = $region12
      $region11: #{tpu_custom_call.1} parent=5 // pred_region
        %s164 = ssub.s32 %s14, 1
        // Predicated region
        $region13: #{tpu_custom_call.1} parent=11 // pred_check
          %p165 = pneg %p61
        $region14: #{tpu_custom_call.1} parent=11 // pred_check_branch
          %167 = sbr.rel (%p165) target = $region16
        $region15: #{tpu_custom_call.1} parent=11 // pred_region
          _
        $region16: #{tpu_custom_call.1} parent=11 // pred_fallthru
          _
        // Predicated region
        $region17: #{tpu_custom_call.1} parent=11 // pred_check
          %p168 = pneg %p82
        $region18: #{tpu_custom_call.1} parent=11 // pred_check_branch
          %170 = sbr.rel (%p168) target = $region20
        $region19: #{tpu_custom_call.1} parent=11 // pred_region
          _
        $region20: #{tpu_custom_call.1} parent=11 // pred_fallthru
          _
        // Predicated region
        $region21: #{tpu_custom_call.1} parent=11 // pred_check
          %p171 = pneg %p103
        $region22: #{tpu_custom_call.1} parent=11 // pred_check_branch
          %173 = sbr.rel (%p171) target = $region24
        $region23: #{tpu_custom_call.1} parent=11 // pred_region
          _
        $region24: #{tpu_custom_call.1} parent=11 // pred_fallthru
          _
        // Predicated region
        $region25: #{tpu_custom_call.1} parent=11 // pred_check
          %p174 = pneg %p124
        $region26: #{tpu_custom_call.1} parent=11 // pred_check_branch
          %176 = sbr.rel (%p174) target = $region28
        $region27: #{tpu_custom_call.1} parent=11 // pred_region
          _
        $region28: #{tpu_custom_call.1} parent=11 // pred_fallthru
          _
      $region12: #{tpu_custom_call.1} parent=5 // pred_fallthru
        _
      %p177 = scmp.lt.s32.totalorder %s14, 2
      // Predicated region
      $region29: #{tpu_custom_call.1} parent=5 // pred_check
        %p178 = pneg %p177
      $region30: #{tpu_custom_call.1} parent=5 // pred_check_branch
        %180 = sbr.rel (%p178) target = $region32
      $region31: #{tpu_custom_call.1} parent=5 // pred_region
        // Predicated region
        $region33: #{tpu_custom_call.1} parent=31 // pred_check
          %p181 = pneg %p34
        $region34: #{tpu_custom_call.1} parent=31 // pred_check_branch
          %183 = sbr.rel (%p181) target = $region36
        $region35: #{tpu_custom_call.1} parent=31 // pred_region
          %p184 = scmp.lt.s32.totalorder %s14, 1
          %s185 = scalar_select %p184, %s14, 1
          %s186 = smul.addr %s185, 54
          %s187 = smul.addr %s186, 8
          %s188 = scalar_lea.vmem %s0, %s187
        $region36: #{tpu_custom_call.1} parent=31 // pred_fallthru
          _
      $region32: #{tpu_custom_call.1} parent=5 // pred_fallthru
        _
      %p189 = scmp.le.s32.totalorder 1, %s14
      %p190 = scmp.lt.s32.totalorder %s14, 3
      %p191 = pnand %p189, %p190
      %p192 = pneg %p191
      // Predicated region
      $region37: #{tpu_custom_call.1} parent=5 // pred_check
        _
      $region38: #{tpu_custom_call.1} parent=5 // pred_check_branch
        %194 = sbr.rel (%p191) target = $region40
      $region39: #{tpu_custom_call.1} parent=5 // pred_region
        %s195 = ssub.s32 %s14, 1
        %p196 = scmp.lt.s32.totalorder %s19, 1
        %s197 = scalar_select %p196, %s19, 1
        %s198 = smul.addr %s197, 54
        %s199 = smul.addr %s198, 8
        %s200 = scalar_lea.vmem %s0, %s199
        %p201 = pneg %p40
        %p202 = pneg %p37
        %p203 = pneg %p61
        %p204 = pneg %p58
        %p205 = pneg %p82
        %p206 = pneg %p79
        %p207 = pneg %p103
        %p208 = pneg %p100
        %p209 = pneg %p124
        %p210 = pneg %p121
        %p211 = pneg %p150
        %p212 = pneg %p147
        %s213 = sand.u32 %s137, 1
        %s214 = scalar_lea.sflag [#allocation3], %s213
        %s215 = sand.u32 %s137, 1
        %s216 = scalar_lea.vmem [#allocation2], %s215
        %p217 = scmp.lt.s32.totalorder %s19, 1
        %s218 = scalar_select %p217, %s19, 1
        %s219 = smul.addr %s218, 54
        %s220 = smul.addr %s219, 8
        %s221 = scalar_lea.vmem %s0, %s220
        %v223 = vld [vmem:[%s221] sm:$0xff]
        %v224 = vld [vmem:[%s221 + $0x8] sm:$0xff]
        %v225 = vld [vmem:[%s221 + $0x10] sm:$0x3]
        %v226 = vld [vmem:[%s221 + $0x18] sm:$0xff]
        %v227 = vld [vmem:[%s221 + $0x20] sm:$0xff]
        %v228 = vld [vmem:[%s221 + $0x28] sm:$0x3]
        %v229 = vld [vmem:[%s221 + $0x30] sm:$0xff]
        %v230 = vld [vmem:[%s221 + $0x38] sm:$0xff]
        %v231 = vld [vmem:[%s221 + $0x40] sm:$0x3]
        %v232 = vld [vmem:[%s221 + $0x48] sm:$0xff]
        %v233 = vld [vmem:[%s221 + $0x50] sm:$0xff]
        %v234 = vld [vmem:[%s221 + $0x58] sm:$0x3]
        %v235 = vld [vmem:[%s221 + $0x60] sm:$0xff]
        %v236 = vld [vmem:[%s221 + $0x68] sm:$0xff]
        %v237 = vld [vmem:[%s221 + $0x70] sm:$0x3]
        %v238 = vld [vmem:[%s221 + $0x78] sm:$0xff]
        %v239 = vld [vmem:[%s221 + $0x80] sm:$0xff]
        %v240 = vld [vmem:[%s221 + $0x88] sm:$0x3]
        %v241 = vld [vmem:[%s221 + $0x90] sm:$0xff]
        %v242 = vld [vmem:[%s221 + $0x98] sm:$0xff]
        %v243 = vld [vmem:[%s221 + $0xa0] sm:$0x3]
        %v244 = vld [vmem:[%s221 + $0xa8] sm:$0xff]
        %v245 = vld [vmem:[%s221 + $0xb0] sm:$0xff]
        %v246 = vld [vmem:[%s221 + $0xb8] sm:$0x3]
        %v247 = vld [vmem:[%s221 + $0xc0] sm:$0xff]
        %v248 = vld [vmem:[%s221 + $0xc8] sm:$0xff]
        %v249 = vld [vmem:[%s221 + $0xd0] sm:$0x3]
        %v250 = vld [vmem:[%s221 + $0xd8] sm:$0xff]
        %v251 = vld [vmem:[%s221 + $0xe0] sm:$0xff]
        %v252 = vld [vmem:[%s221 + $0xe8] sm:$0x3]
        %v253 = vld [vmem:[%s221 + $0xf0] sm:$0xff]
        %v254 = vld [vmem:[%s221 + $0xf8] sm:$0xff]
        %v255 = vld [vmem:[%s221 + $0x100] sm:$0x3]
        %v256 = vld [vmem:[%s221 + $0x108] sm:$0xff]
        %v257 = vld [vmem:[%s221 + $0x110] sm:$0xff]
        %v258 = vld [vmem:[%s221 + $0x118] sm:$0x3]
        %v259 = vld [vmem:[%s221 + $0x120] sm:$0xff]
        %v260 = vld [vmem:[%s221 + $0x128] sm:$0xff]
        %v261 = vld [vmem:[%s221 + $0x130] sm:$0x3]
        %v262 = vld [vmem:[%s221 + $0x138] sm:$0xff]
        %v263 = vld [vmem:[%s221 + $0x140] sm:$0xff]
        %v264 = vld [vmem:[%s221 + $0x148] sm:$0x3]
        %v265 = vld [vmem:[%s221 + $0x150] sm:$0xff]
        %v266 = vld [vmem:[%s221 + $0x158] sm:$0xff]
        %v267 = vld [vmem:[%s221 + $0x160] sm:$0x3]
        %v268 = vld [vmem:[%s221 + $0x168] sm:$0xff]
        %v269 = vld [vmem:[%s221 + $0x170] sm:$0xff]
        %v270 = vld [vmem:[%s221 + $0x178] sm:$0x3]
        %v271 = vld [vmem:[%s221 + $0x180] sm:$0xff]
        %v272 = vld [vmem:[%s221 + $0x188] sm:$0xff]
        %v273 = vld [vmem:[%s221 + $0x190] sm:$0x3]
        %v274 = vld [vmem:[%s221 + $0x198] sm:$0xff]
        %v275 = vld [vmem:[%s221 + $0x1a0] sm:$0xff]
        %v276 = vld [vmem:[%s221 + $0x1a8] sm:$0x3]
        %v277 = vpack.c.bf16 %v224, %v223
        %v278 = vpack.c.bf16 %v227, %v226
        %v279 = vpack.c.bf16 %v230, %v229
        %v280 = vpack.c.bf16 %v233, %v232
        %v281 = vpack.c.bf16 %v236, %v235
        %v282 = vpack.c.bf16 %v239, %v238
        %v283 = vpack.c.bf16 %v242, %v241
        %v284 = vpack.c.bf16 %v245, %v244
        %v285 = vpack.c.bf16 %v248, %v247
        %v286 = vpack.c.bf16 %v251, %v250
        %v287 = vpack.c.bf16 %v254, %v253
        %v288 = vpack.c.bf16 %v257, %v256
        %v289 = vpack.c.bf16 %v260, %v259
        %v290 = vpack.c.bf16 %v263, %v262
        %v291 = vpack.c.bf16 %v266, %v265
        %v292 = vpack.c.bf16 %v269, %v268
        %v293 = vld [vmem:[%s1] sm:$0x3]
        %vm342 = vcmask 1046528
        %v343 = vrot.slane %v223, 1
        %v344 = vrot.slane %v224, 1
        %v345 = vsel %vm342, %v343, %v344
        %v346 = vrot.slane %v225, 1
        %v347 = vsel %vm342, %v344, %v346
        %v348 = vrot.slane %v226, 1
        %v349 = vrot.slane %v227, 1
        %v350 = vsel %vm342, %v348, %v349
        %v351 = vrot.slane %v228, 1
        %v352 = vsel %vm342, %v349, %v351
        %v353 = vrot.slane %v229, 1
        %v354 = vrot.slane %v230, 1
        %v355 = vsel %vm342, %v353, %v354
        %v356 = vrot.slane %v231, 1
        %v357 = vsel %vm342, %v354, %v356
        %v358 = vrot.slane %v232, 1
        %v359 = vrot.slane %v233, 1
        %v360 = vsel %vm342, %v358, %v359
        %v361 = vrot.slane %v234, 1
        %v362 = vsel %vm342, %v359, %v361
        %v363 = vrot.slane %v235, 1
        %v364 = vrot.slane %v236, 1
        %v365 = vsel %vm342, %v363, %v364
        %v366 = vrot.slane %v237, 1
        %v367 = vsel %vm342, %v364, %v366
        %v368 = vrot.slane %v238, 1
        %v369 = vrot.slane %v239, 1
        %v370 = vsel %vm342, %v368, %v369
        %v371 = vrot.slane %v240, 1
        %v372 = vsel %vm342, %v369, %v371
        %v373 = vrot.slane %v241, 1
        %v374 = vrot.slane %v242, 1
        %v375 = vsel %vm342, %v373, %v374
        %v376 = vrot.slane %v243, 1
        %v377 = vsel %vm342, %v374, %v376
        %v378 = vrot.slane %v244, 1
        %v379 = vrot.slane %v245, 1
        %v380 = vsel %vm342, %v378, %v379
        %v381 = vrot.slane %v246, 1
        %v382 = vsel %vm342, %v379, %v381
        %v383 = vrot.slane %v247, 1
        %v384 = vrot.slane %v248, 1
        %v385 = vsel %vm342, %v383, %v384
        %v386 = vrot.slane %v249, 1
        %v387 = vsel %vm342, %v384, %v386
        %v388 = vrot.slane %v250, 1
        %v389 = vrot.slane %v251, 1
        %v390 = vsel %vm342, %v388, %v389
        %v391 = vrot.slane %v252, 1
        %v392 = vsel %vm342, %v389, %v391
        %v393 = vrot.slane %v253, 1
        %v394 = vrot.slane %v254, 1
        %v395 = vsel %vm342, %v393, %v394
        %v396 = vrot.slane %v255, 1
        %v397 = vsel %vm342, %v394, %v396
        %v398 = vrot.slane %v256, 1
        %v399 = vrot.slane %v257, 1
        %v400 = vsel %vm342, %v398, %v399
        %v401 = vrot.slane %v258, 1
        %v402 = vsel %vm342, %v399, %v401
        %v403 = vrot.slane %v259, 1
        %v404 = vrot.slane %v260, 1
        %v405 = vsel %vm342, %v403, %v404
        %v406 = vrot.slane %v261, 1
        %v407 = vsel %vm342, %v404, %v406
        %v408 = vrot.slane %v262, 1
        %v409 = vrot.slane %v263, 1
        %v410 = vsel %vm342, %v408, %v409
        %v411 = vrot.slane %v264, 1
        %v412 = vsel %vm342, %v409, %v411
        %v413 = vrot.slane %v265, 1
        %v414 = vrot.slane %v266, 1
        %v415 = vsel %vm342, %v413, %v414
        %v416 = vrot.slane %v267, 1
        %v417 = vsel %vm342, %v414, %v416
        %v418 = vrot.slane %v268, 1
        %v419 = vrot.slane %v269, 1
        %v420 = vsel %vm342, %v418, %v419
        %v421 = vrot.slane %v270, 1
        %v422 = vsel %vm342, %v419, %v421
        %v455 = vpack.c.bf16 %v347, %v345
        %v456 = vpack.c.bf16 %v352, %v350
        %v457 = vpack.c.bf16 %v357, %v355
        %v458 = vpack.c.bf16 %v362, %v360
        %v459 = vpack.c.bf16 %v367, %v365
        %v460 = vpack.c.bf16 %v372, %v370
        %v461 = vpack.c.bf16 %v377, %v375
        %v462 = vpack.c.bf16 %v382, %v380
        %v463 = vpack.c.bf16 %v387, %v385
        %v464 = vpack.c.bf16 %v392, %v390
        %v465 = vpack.c.bf16 %v397, %v395
        %v466 = vpack.c.bf16 %v402, %v400
        %v467 = vpack.c.bf16 %v407, %v405
        %v468 = vpack.c.bf16 %v412, %v410
        %v469 = vpack.c.bf16 %v417, %v415
        %v470 = vpack.c.bf16 %v422, %v420
        %s471 = scalar_lea.vmem %s1, 2
        %v472 = vld [vmem:[%s471] sm:$0x3]
        %vm473 = vcmask 31744
        %v475 = vsel %vm473, %v455, 0
        %v478 = vsel %vm473, %v456, 0
        %v481 = vsel %vm473, %v457, 0
        %v484 = vsel %vm473, %v458, 0
        %v487 = vsel %vm473, %v459, 0
        %v490 = vsel %vm473, %v460, 0
        %v493 = vsel %vm473, %v461, 0
        %v496 = vsel %vm473, %v462, 0
        %v499 = vsel %vm473, %v463, 0
        %v502 = vsel %vm473, %v464, 0
        %v505 = vsel %vm473, %v465, 0
        %v508 = vsel %vm473, %v466, 0
        %v511 = vsel %vm473, %v467, 0
        %v514 = vsel %vm473, %v468, 0
        %v517 = vsel %vm473, %v469, 0
        %v520 = vsel %vm473, %v470, 0
        %vm522 = vcmask 1041408
        %v524 = vsel %vm522, %v472, 0
        %526 = vmatprep.subr.bf16.mxu0 0
        %527 = vmatpush1.bf16.msra.mxu0 0
        %528 = vmatprep.subr.bf16.mxu0 0
        %529 = vmatpush1.bf16.msra.mxu0 0
        %530 = vmatprep.subr.bf16.mxu0 0
        %531 = vmatpush1.bf16.msra.mxu0 0
        %532 = vmatprep.subr.bf16.mxu0 0
        %533 = vmatpush1.bf16.msra.mxu0 0
        %534 = vmatprep.subr.bf16.mxu0 0
        %535 = vmatpush1.bf16.msra.mxu0 0
        %536 = vmatprep.subr.bf16.mxu0 0
        %537 = vmatpush1.bf16.msra.mxu0 0
        %538 = vmatprep.subr.bf16.mxu0 0
        %539 = vmatpush1.bf16.msra.mxu0 0
        %540 = vmatprep.subr.bf16.mxu0 0
        %541 = vmatpush1.bf16.msra.mxu0 %v524
        %542 = vmatprep.subr.bf16.mxu0 0
        %543 = vmatpush2.bf16.msra.mxu0 0
        %544 = vmatprep.subr.bf16.mxu0 0
        %545 = vmatpush2.bf16.msra.mxu0 0
        %546 = vmatprep.subr.bf16.mxu0 0
        %547 = vmatpush2.bf16.msra.mxu0 0
        %548 = vmatprep.subr.bf16.mxu0 0
        %549 = vmatpush2.bf16.msra.mxu0 0
        %550 = vmatprep.subr.bf16.mxu0 0
        %551 = vmatpush2.bf16.msra.mxu0 0
        %552 = vmatprep.subr.bf16.mxu0 0
        %553 = vmatpush2.bf16.msra.mxu0 0
        %554 = vmatprep.subr.bf16.mxu0 0
        %555 = vmatpush2.bf16.msra.mxu0 0
        %556 = vmatprep.subr.bf16.mxu0 0
        %557 = vmatpush2.bf16.msra.mxu0 0
        %558 = vmatprep.mubr.bf16.mxu0 0
        %559 = vmatmul.mubr.bf16.gmra.mxu0 %v475
        %v560 = vpop.f32.mrf.mxu0
        %v561 = vadd.f32 0.0, %v560
        %v562 = vpop.f32.mrf.mxu0
        %v563 = vpop.f32.mrf.mxu0
        %v564 = vadd.f32 0.0, %v563
        %v565 = vpop.f32.mrf.mxu0
        %566 = vmatprep.mubr.bf16.mxu0 0
        %567 = vmatmul.mubr.bf16.gmra.mxu0 %v478
        %v568 = vpop.f32.mrf.mxu0
        %v569 = vadd.f32 0.0, %v568
        %v570 = vpop.f32.mrf.mxu0
        %v571 = vpop.f32.mrf.mxu0
        %v572 = vadd.f32 0.0, %v571
        %v573 = vpop.f32.mrf.mxu0
        %574 = vmatprep.mubr.bf16.mxu0 0
        %575 = vmatmul.mubr.bf16.gmra.mxu0 %v481
        %v576 = vpop.f32.mrf.mxu0
        %v577 = vadd.f32 0.0, %v576
        %v578 = vpop.f32.mrf.mxu0
        %v579 = vpop.f32.mrf.mxu0
        %v580 = vadd.f32 0.0, %v579
        %v581 = vpop.f32.mrf.mxu0
        %582 = vmatprep.mubr.bf16.mxu0 0
        %583 = vmatmul.mubr.bf16.gmra.mxu0 %v484
        %v584 = vpop.f32.mrf.mxu0
        %v585 = vadd.f32 0.0, %v584
        %v586 = vpop.f32.mrf.mxu0
        %v587 = vpop.f32.mrf.mxu0
        %v588 = vadd.f32 0.0, %v587
        %v589 = vpop.f32.mrf.mxu0
        %590 = vmatprep.mubr.bf16.mxu0 0
        %591 = vmatmul.mubr.bf16.gmra.mxu0 %v487
        %v592 = vpop.f32.mrf.mxu0
        %v593 = vadd.f32 0.0, %v592
        %v594 = vpop.f32.mrf.mxu0
        %v595 = vpop.f32.mrf.mxu0
        %v596 = vadd.f32 0.0, %v595
        %v597 = vpop.f32.mrf.mxu0
        %598 = vmatprep.mubr.bf16.mxu0 0
        %599 = vmatmul.mubr.bf16.gmra.mxu0 %v490
        %v600 = vpop.f32.mrf.mxu0
        %v601 = vadd.f32 0.0, %v600
        %v602 = vpop.f32.mrf.mxu0
        %v603 = vpop.f32.mrf.mxu0
        %v604 = vadd.f32 0.0, %v603
        %v605 = vpop.f32.mrf.mxu0
        %606 = vmatprep.mubr.bf16.mxu0 0
        %607 = vmatmul.mubr.bf16.gmra.mxu0 %v493
        %v608 = vpop.f32.mrf.mxu0
        %v609 = vadd.f32 0.0, %v608
        %v610 = vpop.f32.mrf.mxu0
        %v611 = vpop.f32.mrf.mxu0
        %v612 = vadd.f32 0.0, %v611
        %v613 = vpop.f32.mrf.mxu0
        %614 = vmatprep.mubr.bf16.mxu0 0
        %615 = vmatmul.mubr.bf16.gmra.mxu0 %v496
        %v616 = vpop.f32.mrf.mxu0
        %v617 = vadd.f32 0.0, %v616
        %v618 = vpop.f32.mrf.mxu0
        %v619 = vpop.f32.mrf.mxu0
        %v620 = vadd.f32 0.0, %v619
        %v621 = vpop.f32.mrf.mxu0
        %622 = vmatprep.mubr.bf16.mxu0 0
        %623 = vmatmul.mubr.bf16.gmra.mxu0 %v499
        %v624 = vpop.f32.mrf.mxu0
        %v625 = vadd.f32 0.0, %v624
        %v626 = vpop.f32.mrf.mxu0
        %v627 = vpop.f32.mrf.mxu0
        %v628 = vadd.f32 0.0, %v627
        %v629 = vpop.f32.mrf.mxu0
        %630 = vmatprep.mubr.bf16.mxu0 0
        %631 = vmatmul.mubr.bf16.gmra.mxu0 %v502
        %v632 = vpop.f32.mrf.mxu0
        %v633 = vadd.f32 0.0, %v632
        %v634 = vpop.f32.mrf.mxu0
        %v635 = vpop.f32.mrf.mxu0
        %v636 = vadd.f32 0.0, %v635
        %v637 = vpop.f32.mrf.mxu0
        %638 = vmatprep.mubr.bf16.mxu0 0
        %639 = vmatmul.mubr.bf16.gmra.mxu0 %v505
        %v640 = vpop.f32.mrf.mxu0
        %v641 = vadd.f32 0.0, %v640
        %v642 = vpop.f32.mrf.mxu0
        %v643 = vpop.f32.mrf.mxu0
        %v644 = vadd.f32 0.0, %v643
        %v645 = vpop.f32.mrf.mxu0
        %646 = vmatprep.mubr.bf16.mxu0 0
        %647 = vmatmul.mubr.bf16.gmra.mxu0 %v508
        %v648 = vpop.f32.mrf.mxu0
        %v649 = vadd.f32 0.0, %v648
        %v650 = vpop.f32.mrf.mxu0
        %v651 = vpop.f32.mrf.mxu0
        %v652 = vadd.f32 0.0, %v651
        %v653 = vpop.f32.mrf.mxu0
        %654 = vmatprep.mubr.bf16.mxu0 0
        %655 = vmatmul.mubr.bf16.gmra.mxu0 %v511
        %v656 = vpop.f32.mrf.mxu0
        %v657 = vadd.f32 0.0, %v656
        %v658 = vpop.f32.mrf.mxu0
        %v659 = vpop.f32.mrf.mxu0
        %v660 = vadd.f32 0.0, %v659
        %v661 = vpop.f32.mrf.mxu0
        %662 = vmatprep.mubr.bf16.mxu0 0
        %663 = vmatmul.mubr.bf16.gmra.mxu0 %v514
        %v664 = vpop.f32.mrf.mxu0
        %v665 = vadd.f32 0.0, %v664
        %v666 = vpop.f32.mrf.mxu0
        %v667 = vpop.f32.mrf.mxu0
        %v668 = vadd.f32 0.0, %v667
        %v669 = vpop.f32.mrf.mxu0
        %670 = vmatprep.mubr.bf16.mxu0 0
        %671 = vmatmul.mubr.bf16.gmra.mxu0 %v517
        %v672 = vpop.f32.mrf.mxu0
        %v673 = vadd.f32 0.0, %v672
        %v674 = vpop.f32.mrf.mxu0
        %v675 = vpop.f32.mrf.mxu0
        %v676 = vadd.f32 0.0, %v675
        %v677 = vpop.f32.mrf.mxu0
        %678 = vmatprep.mubr.bf16.mxu0 0
        %679 = vmatmul.mubr.bf16.gmra.mxu0 %v520
        %v680 = vpop.f32.mrf.mxu0
        %v681 = vadd.f32 0.0, %v680
        %v682 = vpop.f32.mrf.mxu0
        %v683 = vpop.f32.mrf.mxu0
        %v684 = vadd.f32 0.0, %v683
        %v685 = vpop.f32.mrf.mxu0
        %686 = vdwg.mxu0
        %v688 = vsel %vm473, %v277, 0
        %v691 = vsel %vm473, %v278, 0
        %v694 = vsel %vm473, %v279, 0
        %v697 = vsel %vm473, %v280, 0
        %v700 = vsel %vm473, %v281, 0
        %v703 = vsel %vm473, %v282, 0
        %v706 = vsel %vm473, %v283, 0
        %v709 = vsel %vm473, %v284, 0
        %v712 = vsel %vm473, %v285, 0
        %v715 = vsel %vm473, %v286, 0
        %v718 = vsel %vm473, %v287, 0
        %v721 = vsel %vm473, %v288, 0
        %v724 = vsel %vm473, %v289, 0
        %v727 = vsel %vm473, %v290, 0
        %v730 = vsel %vm473, %v291, 0
        %v733 = vsel %vm473, %v292, 0
        %v736 = vsel %vm522, %v293, 0
        %738 = vmatprep.subr.bf16.mxu0 0
        %739 = vmatpush1.bf16.msra.mxu0 0
        %740 = vmatprep.subr.bf16.mxu0 0
        %741 = vmatpush1.bf16.msra.mxu0 0
        %742 = vmatprep.subr.bf16.mxu0 0
        %743 = vmatpush1.bf16.msra.mxu0 0
        %744 = vmatprep.subr.bf16.mxu0 0
        %745 = vmatpush1.bf16.msra.mxu0 0
        %746 = vmatprep.subr.bf16.mxu0 0
        %747 = vmatpush1.bf16.msra.mxu0 0
        %748 = vmatprep.subr.bf16.mxu0 0
        %749 = vmatpush1.bf16.msra.mxu0 0
        %750 = vmatprep.subr.bf16.mxu0 0
        %751 = vmatpush1.bf16.msra.mxu0 0
        %752 = vmatprep.subr.bf16.mxu0 0
        %753 = vmatpush1.bf16.msra.mxu0 %v736
        %754 = vmatprep.subr.bf16.mxu0 0
        %755 = vmatpush2.bf16.msra.mxu0 0
        %756 = vmatprep.subr.bf16.mxu0 0
        %757 = vmatpush2.bf16.msra.mxu0 0
        %758 = vmatprep.subr.bf16.mxu0 0
        %759 = vmatpush2.bf16.msra.mxu0 0
        %760 = vmatprep.subr.bf16.mxu0 0
        %761 = vmatpush2.bf16.msra.mxu0 0
        %762 = vmatprep.subr.bf16.mxu0 0
        %763 = vmatpush2.bf16.msra.mxu0 0
        %764 = vmatprep.subr.bf16.mxu0 0
        %765 = vmatpush2.bf16.msra.mxu0 0
        %766 = vmatprep.subr.bf16.mxu0 0
        %767 = vmatpush2.bf16.msra.mxu0 0
        %768 = vmatprep.subr.bf16.mxu0 0
        %769 = vmatpush2.bf16.msra.mxu0 0
        %770 = vmatprep.mubr.bf16.mxu0 0
        %771 = vmatmul.mubr.bf16.gmra.mxu0 %v688
        %v772 = vpop.f32.mrf.mxu0
        %v773 = vadd.f32 %v561, %v772
        %v774 = vpop.f32.mrf.mxu0
        %v775 = vpop.f32.mrf.mxu0
        %v776 = vadd.f32 %v564, %v775
        %v777 = vpop.f32.mrf.mxu0
        %778 = vmatprep.mubr.bf16.mxu0 0
        %779 = vmatmul.mubr.bf16.gmra.mxu0 %v691
        %v780 = vpop.f32.mrf.mxu0
        %v781 = vadd.f32 %v569, %v780
        %v782 = vpop.f32.mrf.mxu0
        %v783 = vpop.f32.mrf.mxu0
        %v784 = vadd.f32 %v572, %v783
        %v785 = vpop.f32.mrf.mxu0
        %786 = vmatprep.mubr.bf16.mxu0 0
        %787 = vmatmul.mubr.bf16.gmra.mxu0 %v694
        %v788 = vpop.f32.mrf.mxu0
        %v789 = vadd.f32 %v577, %v788
        %v790 = vpop.f32.mrf.mxu0
        %v791 = vpop.f32.mrf.mxu0
        %v792 = vadd.f32 %v580, %v791
        %v793 = vpop.f32.mrf.mxu0
        %794 = vmatprep.mubr.bf16.mxu0 0
        %795 = vmatmul.mubr.bf16.gmra.mxu0 %v697
        %v796 = vpop.f32.mrf.mxu0
        %v797 = vadd.f32 %v585, %v796
        %v798 = vpop.f32.mrf.mxu0
        %v799 = vpop.f32.mrf.mxu0
        %v800 = vadd.f32 %v588, %v799
        %v801 = vpop.f32.mrf.mxu0
        %802 = vmatprep.mubr.bf16.mxu0 0
        %803 = vmatmul.mubr.bf16.gmra.mxu0 %v700
        %v804 = vpop.f32.mrf.mxu0
        %v805 = vadd.f32 %v593, %v804
        %v806 = vpop.f32.mrf.mxu0
        %v807 = vpop.f32.mrf.mxu0
        %v808 = vadd.f32 %v596, %v807
        %v809 = vpop.f32.mrf.mxu0
        %810 = vmatprep.mubr.bf16.mxu0 0
        %811 = vmatmul.mubr.bf16.gmra.mxu0 %v703
        %v812 = vpop.f32.mrf.mxu0
        %v813 = vadd.f32 %v601, %v812
        %v814 = vpop.f32.mrf.mxu0
        %v815 = vpop.f32.mrf.mxu0
        %v816 = vadd.f32 %v604, %v815
        %v817 = vpop.f32.mrf.mxu0
        %818 = vmatprep.mubr.bf16.mxu0 0
        %819 = vmatmul.mubr.bf16.gmra.mxu0 %v706
        %v820 = vpop.f32.mrf.mxu0
        %v821 = vadd.f32 %v609, %v820
        %v822 = vpop.f32.mrf.mxu0
        %v823 = vpop.f32.mrf.mxu0
        %v824 = vadd.f32 %v612, %v823
        %v825 = vpop.f32.mrf.mxu0
        %826 = vmatprep.mubr.bf16.mxu0 0
        %827 = vmatmul.mubr.bf16.gmra.mxu0 %v709
        %v828 = vpop.f32.mrf.mxu0
        %v829 = vadd.f32 %v617, %v828
        %v830 = vpop.f32.mrf.mxu0
        %v831 = vpop.f32.mrf.mxu0
        %v832 = vadd.f32 %v620, %v831
        %v833 = vpop.f32.mrf.mxu0
        %834 = vmatprep.mubr.bf16.mxu0 0
        %835 = vmatmul.mubr.bf16.gmra.mxu0 %v712
        %v836 = vpop.f32.mrf.mxu0
        %v837 = vadd.f32 %v625, %v836
        %v838 = vpop.f32.mrf.mxu0
        %v839 = vpop.f32.mrf.mxu0
        %v840 = vadd.f32 %v628, %v839
        %v841 = vpop.f32.mrf.mxu0
        %842 = vmatprep.mubr.bf16.mxu0 0
        %843 = vmatmul.mubr.bf16.gmra.mxu0 %v715
        %v844 = vpop.f32.mrf.mxu0
        %v845 = vadd.f32 %v633, %v844
        %v846 = vpop.f32.mrf.mxu0
        %v847 = vpop.f32.mrf.mxu0
        %v848 = vadd.f32 %v636, %v847
        %v849 = vpop.f32.mrf.mxu0
        %850 = vmatprep.mubr.bf16.mxu0 0
        %851 = vmatmul.mubr.bf16.gmra.mxu0 %v718
        %v852 = vpop.f32.mrf.mxu0
        %v853 = vadd.f32 %v641, %v852
        %v854 = vpop.f32.mrf.mxu0
        %v855 = vpop.f32.mrf.mxu0
        %v856 = vadd.f32 %v644, %v855
        %v857 = vpop.f32.mrf.mxu0
        %858 = vmatprep.mubr.bf16.mxu0 0
        %859 = vmatmul.mubr.bf16.gmra.mxu0 %v721
        %v860 = vpop.f32.mrf.mxu0
        %v861 = vadd.f32 %v649, %v860
        %v862 = vpop.f32.mrf.mxu0
        %v863 = vpop.f32.mrf.mxu0
        %v864 = vadd.f32 %v652, %v863
        %v865 = vpop.f32.mrf.mxu0
        %866 = vmatprep.mubr.bf16.mxu0 0
        %867 = vmatmul.mubr.bf16.gmra.mxu0 %v724
        %v868 = vpop.f32.mrf.mxu0
        %v869 = vadd.f32 %v657, %v868
        %v870 = vpop.f32.mrf.mxu0
        %v871 = vpop.f32.mrf.mxu0
        %v872 = vadd.f32 %v660, %v871
        %v873 = vpop.f32.mrf.mxu0
        %874 = vmatprep.mubr.bf16.mxu0 0
        %875 = vmatmul.mubr.bf16.gmra.mxu0 %v727
        %v876 = vpop.f32.mrf.mxu0
        %v877 = vadd.f32 %v665, %v876
        %v878 = vpop.f32.mrf.mxu0
        %v879 = vpop.f32.mrf.mxu0
        %v880 = vadd.f32 %v668, %v879
        %v881 = vpop.f32.mrf.mxu0
        %882 = vmatprep.mubr.bf16.mxu0 0
        %883 = vmatmul.mubr.bf16.gmra.mxu0 %v730
        %v884 = vpop.f32.mrf.mxu0
        %v885 = vadd.f32 %v673, %v884
        %v886 = vpop.f32.mrf.mxu0
        %v887 = vpop.f32.mrf.mxu0
        %v888 = vadd.f32 %v676, %v887
        %v889 = vpop.f32.mrf.mxu0
        %890 = vmatprep.mubr.bf16.mxu0 0
        %891 = vmatmul.mubr.bf16.gmra.mxu0 %v733
        %v892 = vpop.f32.mrf.mxu0
        %v893 = vadd.f32 %v681, %v892
        %v894 = vpop.f32.mrf.mxu0
        %v895 = vpop.f32.mrf.mxu0
        %v896 = vadd.f32 %v684, %v895
        %v897 = vpop.f32.mrf.mxu0
        %898 = vdwg.mxu0
        %vm899 = vcmask 1045504
        %v900 = vrot.slane %v223, 2
        %v901 = vrot.slane %v224, 2
        %v902 = vsel %vm899, %v900, %v901
        %v903 = vrot.slane %v225, 2
        %v904 = vsel %vm899, %v901, %v903
        %v905 = vrot.slane %v226, 2
        %v906 = vrot.slane %v227, 2
        %v907 = vsel %vm899, %v905, %v906
        %v908 = vrot.slane %v228, 2
        %v909 = vsel %vm899, %v906, %v908
        %v910 = vrot.slane %v229, 2
        %v911 = vrot.slane %v230, 2
        %v912 = vsel %vm899, %v910, %v911
        %v913 = vrot.slane %v231, 2
        %v914 = vsel %vm899, %v911, %v913
        %v915 = vrot.slane %v232, 2
        %v916 = vrot.slane %v233, 2
        %v917 = vsel %vm899, %v915, %v916
        %v918 = vrot.slane %v234, 2
        %v919 = vsel %vm899, %v916, %v918
        %v920 = vrot.slane %v235, 2
        %v921 = vrot.slane %v236, 2
        %v922 = vsel %vm899, %v920, %v921
        %v923 = vrot.slane %v237, 2
        %v924 = vsel %vm899, %v921, %v923
        %v925 = vrot.slane %v238, 2
        %v926 = vrot.slane %v239, 2
        %v927 = vsel %vm899, %v925, %v926
        %v928 = vrot.slane %v240, 2
        %v929 = vsel %vm899, %v926, %v928
        %v930 = vrot.slane %v241, 2
        %v931 = vrot.slane %v242, 2
        %v932 = vsel %vm899, %v930, %v931
        %v933 = vrot.slane %v243, 2
        %v934 = vsel %vm899, %v931, %v933
        %v935 = vrot.slane %v244, 2
        %v936 = vrot.slane %v245, 2
        %v937 = vsel %vm899, %v935, %v936
        %v938 = vrot.slane %v246, 2
        %v939 = vsel %vm899, %v936, %v938
        %v940 = vrot.slane %v247, 2
        %v941 = vrot.slane %v248, 2
        %v942 = vsel %vm899, %v940, %v941
        %v943 = vrot.slane %v249, 2
        %v944 = vsel %vm899, %v941, %v943
        %v945 = vrot.slane %v250, 2
        %v946 = vrot.slane %v251, 2
        %v947 = vsel %vm899, %v945, %v946
        %v948 = vrot.slane %v252, 2
        %v949 = vsel %vm899, %v946, %v948
        %v950 = vrot.slane %v253, 2
        %v951 = vrot.slane %v254, 2
        %v952 = vsel %vm899, %v950, %v951
        %v953 = vrot.slane %v255, 2
        %v954 = vsel %vm899, %v951, %v953
        %v955 = vrot.slane %v256, 2
        %v956 = vrot.slane %v257, 2
        %v957 = vsel %vm899, %v955, %v956
        %v958 = vrot.slane %v258, 2
        %v959 = vsel %vm899, %v956, %v958
        %v960 = vrot.slane %v259, 2
        %v961 = vrot.slane %v260, 2
        %v962 = vsel %vm899, %v960, %v961
        %v963 = vrot.slane %v261, 2
        %v964 = vsel %vm899, %v961, %v963
        %v965 = vrot.slane %v262, 2
        %v966 = vrot.slane %v263, 2
        %v967 = vsel %vm899, %v965, %v966
        %v968 = vrot.slane %v264, 2
        %v969 = vsel %vm899, %v966, %v968
        %v970 = vrot.slane %v265, 2
        %v971 = vrot.slane %v266, 2
        %v972 = vsel %vm899, %v970, %v971
        %v973 = vrot.slane %v267, 2
        %v974 = vsel %vm899, %v971, %v973
        %v975 = vrot.slane %v268, 2
        %v976 = vrot.slane %v269, 2
        %v977 = vsel %vm899, %v975, %v976
        %v978 = vrot.slane %v270, 2
        %v979 = vsel %vm899, %v976, %v978
        %v1012 = vpack.c.bf16 %v904, %v902
        %v1013 = vpack.c.bf16 %v909, %v907
        %v1014 = vpack.c.bf16 %v914, %v912
        %v1015 = vpack.c.bf16 %v919, %v917
        %v1016 = vpack.c.bf16 %v924, %v922
        %v1017 = vpack.c.bf16 %v929, %v927
        %v1018 = vpack.c.bf16 %v934, %v932
        %v1019 = vpack.c.bf16 %v939, %v937
        %v1020 = vpack.c.bf16 %v944, %v942
        %v1021 = vpack.c.bf16 %v949, %v947
        %v1022 = vpack.c.bf16 %v954, %v952
        %v1023 = vpack.c.bf16 %v959, %v957
        %v1024 = vpack.c.bf16 %v964, %v962
        %v1025 = vpack.c.bf16 %v969, %v967
        %v1026 = vpack.c.bf16 %v974, %v972
        %v1027 = vpack.c.bf16 %v979, %v977
        %s1028 = scalar_lea.vmem %s1, 4
        %v1029 = vld [vmem:[%s1028] sm:$0x3]
        %v1031 = vsel %vm473, %v1012, 0
        %v1034 = vsel %vm473, %v1013, 0
        %v1037 = vsel %vm473, %v1014, 0
        %v1040 = vsel %vm473, %v1015, 0
        %v1043 = vsel %vm473, %v1016, 0
        %v1046 = vsel %vm473, %v1017, 0
        %v1049 = vsel %vm473, %v1018, 0
        %v1052 = vsel %vm473, %v1019, 0
        %v1055 = vsel %vm473, %v1020, 0
        %v1058 = vsel %vm473, %v1021, 0
        %v1061 = vsel %vm473, %v1022, 0
        %v1064 = vsel %vm473, %v1023, 0
        %v1067 = vsel %vm473, %v1024, 0
        %v1070 = vsel %vm473, %v1025, 0
        %v1073 = vsel %vm473, %v1026, 0
        %v1076 = vsel %vm473, %v1027, 0
        %v1079 = vsel %vm522, %v1029, 0
        %1081 = vmatprep.subr.bf16.mxu0 0
        %1082 = vmatpush1.bf16.msra.mxu0 0
        %1083 = vmatprep.subr.bf16.mxu0 0
        %1084 = vmatpush1.bf16.msra.mxu0 0
        %1085 = vmatprep.subr.bf16.mxu0 0
        %1086 = vmatpush1.bf16.msra.mxu0 0
        %1087 = vmatprep.subr.bf16.mxu0 0
        %1088 = vmatpush1.bf16.msra.mxu0 0
        %1089 = vmatprep.subr.bf16.mxu0 0
        %1090 = vmatpush1.bf16.msra.mxu0 0
        %1091 = vmatprep.subr.bf16.mxu0 0
        %1092 = vmatpush1.bf16.msra.mxu0 0
        %1093 = vmatprep.subr.bf16.mxu0 0
        %1094 = vmatpush1.bf16.msra.mxu0 0
        %1095 = vmatprep.subr.bf16.mxu0 0
        %1096 = vmatpush1.bf16.msra.mxu0 %v1079
        %1097 = vmatprep.subr.bf16.mxu0 0
        %1098 = vmatpush2.bf16.msra.mxu0 0
        %1099 = vmatprep.subr.bf16.mxu0 0
        %1100 = vmatpush2.bf16.msra.mxu0 0
        %1101 = vmatprep.subr.bf16.mxu0 0
        %1102 = vmatpush2.bf16.msra.mxu0 0
        %1103 = vmatprep.subr.bf16.mxu0 0
        %1104 = vmatpush2.bf16.msra.mxu0 0
        %1105 = vmatprep.subr.bf16.mxu0 0
        %1106 = vmatpush2.bf16.msra.mxu0 0
        %1107 = vmatprep.subr.bf16.mxu0 0
        %1108 = vmatpush2.bf16.msra.mxu0 0
        %1109 = vmatprep.subr.bf16.mxu0 0
        %1110 = vmatpush2.bf16.msra.mxu0 0
        %1111 = vmatprep.subr.bf16.mxu0 0
        %1112 = vmatpush2.bf16.msra.mxu0 0
        %1113 = vmatprep.mubr.bf16.mxu0 0
        %1114 = vmatmul.mubr.bf16.gmra.mxu0 %v1031
        %v1115 = vpop.f32.mrf.mxu0
        %v1116 = vadd.f32 0.0, %v1115
        %v1117 = vpop.f32.mrf.mxu0
        %v1118 = vpop.f32.mrf.mxu0
        %v1119 = vadd.f32 0.0, %v1118
        %v1120 = vpop.f32.mrf.mxu0
        %1121 = vmatprep.mubr.bf16.mxu0 0
        %1122 = vmatmul.mubr.bf16.gmra.mxu0 %v1034
        %v1123 = vpop.f32.mrf.mxu0
        %v1124 = vadd.f32 0.0, %v1123
        %v1125 = vpop.f32.mrf.mxu0
        %v1126 = vpop.f32.mrf.mxu0
        %v1127 = vadd.f32 0.0, %v1126
        %v1128 = vpop.f32.mrf.mxu0
        %1129 = vmatprep.mubr.bf16.mxu0 0
        %1130 = vmatmul.mubr.bf16.gmra.mxu0 %v1037
        %v1131 = vpop.f32.mrf.mxu0
        %v1132 = vadd.f32 0.0, %v1131
        %v1133 = vpop.f32.mrf.mxu0
        %v1134 = vpop.f32.mrf.mxu0
        %v1135 = vadd.f32 0.0, %v1134
        %v1136 = vpop.f32.mrf.mxu0
        %1137 = vmatprep.mubr.bf16.mxu0 0
        %1138 = vmatmul.mubr.bf16.gmra.mxu0 %v1040
        %v1139 = vpop.f32.mrf.mxu0
        %v1140 = vadd.f32 0.0, %v1139
        %v1141 = vpop.f32.mrf.mxu0
        %v1142 = vpop.f32.mrf.mxu0
        %v1143 = vadd.f32 0.0, %v1142
        %v1144 = vpop.f32.mrf.mxu0
        %1145 = vmatprep.mubr.bf16.mxu0 0
        %1146 = vmatmul.mubr.bf16.gmra.mxu0 %v1043
        %v1147 = vpop.f32.mrf.mxu0
        %v1148 = vadd.f32 0.0, %v1147
        %v1149 = vpop.f32.mrf.mxu0
        %v1150 = vpop.f32.mrf.mxu0
        %v1151 = vadd.f32 0.0, %v1150
        %v1152 = vpop.f32.mrf.mxu0
        %1153 = vmatprep.mubr.bf16.mxu0 0
        %1154 = vmatmul.mubr.bf16.gmra.mxu0 %v1046
        %v1155 = vpop.f32.mrf.mxu0
        %v1156 = vadd.f32 0.0, %v1155
        %v1157 = vpop.f32.mrf.mxu0
        %v1158 = vpop.f32.mrf.mxu0
        %v1159 = vadd.f32 0.0, %v1158
        %v1160 = vpop.f32.mrf.mxu0
        %1161 = vmatprep.mubr.bf16.mxu0 0
        %1162 = vmatmul.mubr.bf16.gmra.mxu0 %v1049
        %v1163 = vpop.f32.mrf.mxu0
        %v1164 = vadd.f32 0.0, %v1163
        %v1165 = vpop.f32.mrf.mxu0
        %v1166 = vpop.f32.mrf.mxu0
        %v1167 = vadd.f32 0.0, %v1166
        %v1168 = vpop.f32.mrf.mxu0
        %1169 = vmatprep.mubr.bf16.mxu0 0
        %1170 = vmatmul.mubr.bf16.gmra.mxu0 %v1052
        %v1171 = vpop.f32.mrf.mxu0
        %v1172 = vadd.f32 0.0, %v1171
        %v1173 = vpop.f32.mrf.mxu0
        %v1174 = vpop.f32.mrf.mxu0
        %v1175 = vadd.f32 0.0, %v1174
        %v1176 = vpop.f32.mrf.mxu0
        %1177 = vmatprep.mubr.bf16.mxu0 0
        %1178 = vmatmul.mubr.bf16.gmra.mxu0 %v1055
        %v1179 = vpop.f32.mrf.mxu0
        %v1180 = vadd.f32 0.0, %v1179
        %v1181 = vpop.f32.mrf.mxu0
        %v1182 = vpop.f32.mrf.mxu0
        %v1183 = vadd.f32 0.0, %v1182
        %v1184 = vpop.f32.mrf.mxu0
        %1185 = vmatprep.mubr.bf16.mxu0 0
        %1186 = vmatmul.mubr.bf16.gmra.mxu0 %v1058
        %v1187 = vpop.f32.mrf.mxu0
        %v1188 = vadd.f32 0.0, %v1187
        %v1189 = vpop.f32.mrf.mxu0
        %v1190 = vpop.f32.mrf.mxu0
        %v1191 = vadd.f32 0.0, %v1190
        %v1192 = vpop.f32.mrf.mxu0
        %1193 = vmatprep.mubr.bf16.mxu0 0
        %1194 = vmatmul.mubr.bf16.gmra.mxu0 %v1061
        %v1195 = vpop.f32.mrf.mxu0
        %v1196 = vadd.f32 0.0, %v1195
        %v1197 = vpop.f32.mrf.mxu0
        %v1198 = vpop.f32.mrf.mxu0
        %v1199 = vadd.f32 0.0, %v1198
        %v1200 = vpop.f32.mrf.mxu0
        %1201 = vmatprep.mubr.bf16.mxu0 0
        %1202 = vmatmul.mubr.bf16.gmra.mxu0 %v1064
        %v1203 = vpop.f32.mrf.mxu0
        %v1204 = vadd.f32 0.0, %v1203
        %v1205 = vpop.f32.mrf.mxu0
        %v1206 = vpop.f32.mrf.mxu0
        %v1207 = vadd.f32 0.0, %v1206
        %v1208 = vpop.f32.mrf.mxu0
        %1209 = vmatprep.mubr.bf16.mxu0 0
        %1210 = vmatmul.mubr.bf16.gmra.mxu0 %v1067
        %v1211 = vpop.f32.mrf.mxu0
        %v1212 = vadd.f32 0.0, %v1211
        %v1213 = vpop.f32.mrf.mxu0
        %v1214 = vpop.f32.mrf.mxu0
        %v1215 = vadd.f32 0.0, %v1214
        %v1216 = vpop.f32.mrf.mxu0
        %1217 = vmatprep.mubr.bf16.mxu0 0
        %1218 = vmatmul.mubr.bf16.gmra.mxu0 %v1070
        %v1219 = vpop.f32.mrf.mxu0
        %v1220 = vadd.f32 0.0, %v1219
        %v1221 = vpop.f32.mrf.mxu0
        %v1222 = vpop.f32.mrf.mxu0
        %v1223 = vadd.f32 0.0, %v1222
        %v1224 = vpop.f32.mrf.mxu0
        %1225 = vmatprep.mubr.bf16.mxu0 0
        %1226 = vmatmul.mubr.bf16.gmra.mxu0 %v1073
        %v1227 = vpop.f32.mrf.mxu0
        %v1228 = vadd.f32 0.0, %v1227
        %v1229 = vpop.f32.mrf.mxu0
        %v1230 = vpop.f32.mrf.mxu0
        %v1231 = vadd.f32 0.0, %v1230
        %v1232 = vpop.f32.mrf.mxu0
        %1233 = vmatprep.mubr.bf16.mxu0 0
        %1234 = vmatmul.mubr.bf16.gmra.mxu0 %v1076
        %v1235 = vpop.f32.mrf.mxu0
        %v1236 = vadd.f32 0.0, %v1235
        %v1237 = vpop.f32.mrf.mxu0
        %v1238 = vpop.f32.mrf.mxu0
        %v1239 = vadd.f32 0.0, %v1238
        %v1240 = vpop.f32.mrf.mxu0
        %1241 = vdwg.mxu0
        %v1242 = vadd.f32 %v773, %v1116
        %v1243 = vadd.f32 %v776, %v1119
        %v1244 = vadd.f32 %v781, %v1124
        %v1245 = vadd.f32 %v784, %v1127
        %v1246 = vadd.f32 %v789, %v1132
        %v1247 = vadd.f32 %v792, %v1135
        %v1248 = vadd.f32 %v797, %v1140
        %v1249 = vadd.f32 %v800, %v1143
        %v1250 = vadd.f32 %v805, %v1148
        %v1251 = vadd.f32 %v808, %v1151
        %v1252 = vadd.f32 %v813, %v1156
        %v1253 = vadd.f32 %v816, %v1159
        %v1254 = vadd.f32 %v821, %v1164
        %v1255 = vadd.f32 %v824, %v1167
        %v1256 = vadd.f32 %v829, %v1172
        %v1257 = vadd.f32 %v832, %v1175
        %v1258 = vadd.f32 %v837, %v1180
        %v1259 = vadd.f32 %v840, %v1183
        %v1260 = vadd.f32 %v845, %v1188
        %v1261 = vadd.f32 %v848, %v1191
        %v1262 = vadd.f32 %v853, %v1196
        %v1263 = vadd.f32 %v856, %v1199
        %v1264 = vadd.f32 %v861, %v1204
        %v1265 = vadd.f32 %v864, %v1207
        %v1266 = vadd.f32 %v869, %v1212
        %v1267 = vadd.f32 %v872, %v1215
        %v1268 = vadd.f32 %v877, %v1220
        %v1269 = vadd.f32 %v880, %v1223
        %v1270 = vadd.f32 %v885, %v1228
        %v1271 = vadd.f32 %v888, %v1231
        %v1272 = vadd.f32 %v893, %v1236
        %v1273 = vadd.f32 %v896, %v1239
        %v1274 = vpack.c.bf16 %v272, %v271
        %s1275 = scalar_lea.vmem %s1, 6
        %v1276 = vld [vmem:[%s1275] sm:$0x3]
        %v1278 = vsel %vm473, %v1274, 0
        %v1281 = vsel %vm522, %v1276, 0
        %1283 = vmatprep.subr.bf16.mxu0 0
        %1284 = vmatpush1.bf16.msra.mxu0 0
        %1285 = vmatprep.subr.bf16.mxu0 0
        %1286 = vmatpush1.bf16.msra.mxu0 0
        %1287 = vmatprep.subr.bf16.mxu0 0
        %1288 = vmatpush1.bf16.msra.mxu0 0
        %1289 = vmatprep.subr.bf16.mxu0 0
        %1290 = vmatpush1.bf16.msra.mxu0 0
        %1291 = vmatprep.subr.bf16.mxu0 0
        %1292 = vmatpush1.bf16.msra.mxu0 0
        %1293 = vmatprep.subr.bf16.mxu0 0
        %1294 = vmatpush1.bf16.msra.mxu0 0
        %1295 = vmatprep.subr.bf16.mxu0 0
        %1296 = vmatpush1.bf16.msra.mxu0 0
        %1297 = vmatprep.subr.bf16.mxu0 0
        %1298 = vmatpush1.bf16.msra.mxu0 %v1281
        %1299 = vmatprep.subr.bf16.mxu0 0
        %1300 = vmatpush2.bf16.msra.mxu0 0
        %1301 = vmatprep.subr.bf16.mxu0 0
        %1302 = vmatpush2.bf16.msra.mxu0 0
        %1303 = vmatprep.subr.bf16.mxu0 0
        %1304 = vmatpush2.bf16.msra.mxu0 0
        %1305 = vmatprep.subr.bf16.mxu0 0
        %1306 = vmatpush2.bf16.msra.mxu0 0
        %1307 = vmatprep.subr.bf16.mxu0 0
        %1308 = vmatpush2.bf16.msra.mxu0 0
        %1309 = vmatprep.subr.bf16.mxu0 0
        %1310 = vmatpush2.bf16.msra.mxu0 0
        %1311 = vmatprep.subr.bf16.mxu0 0
        %1312 = vmatpush2.bf16.msra.mxu0 0
        %1313 = vmatprep.subr.bf16.mxu0 0
        %1314 = vmatpush2.bf16.msra.mxu0 0
        %1315 = vmatprep.mubr.bf16.mxu0 0
        %1316 = vmatmul.mubr.bf16.gmra.mxu0 %v691
        %v1317 = vpop.f32.mrf.mxu0
        %v1318 = vadd.f32 0.0, %v1317
        %v1319 = vpop.f32.mrf.mxu0
        %v1320 = vpop.f32.mrf.mxu0
        %v1321 = vadd.f32 0.0, %v1320
        %v1322 = vpop.f32.mrf.mxu0
        %1323 = vmatprep.mubr.bf16.mxu0 0
        %1324 = vmatmul.mubr.bf16.gmra.mxu0 %v694
        %v1325 = vpop.f32.mrf.mxu0
        %v1326 = vadd.f32 0.0, %v1325
        %v1327 = vpop.f32.mrf.mxu0
        %v1328 = vpop.f32.mrf.mxu0
        %v1329 = vadd.f32 0.0, %v1328
        %v1330 = vpop.f32.mrf.mxu0
        %1331 = vmatprep.mubr.bf16.mxu0 0
        %1332 = vmatmul.mubr.bf16.gmra.mxu0 %v697
        %v1333 = vpop.f32.mrf.mxu0
        %v1334 = vadd.f32 0.0, %v1333
        %v1335 = vpop.f32.mrf.mxu0
        %v1336 = vpop.f32.mrf.mxu0
        %v1337 = vadd.f32 0.0, %v1336
        %v1338 = vpop.f32.mrf.mxu0
        %1339 = vmatprep.mubr.bf16.mxu0 0
        %1340 = vmatmul.mubr.bf16.gmra.mxu0 %v700
        %v1341 = vpop.f32.mrf.mxu0
        %v1342 = vadd.f32 0.0, %v1341
        %v1343 = vpop.f32.mrf.mxu0
        %v1344 = vpop.f32.mrf.mxu0
        %v1345 = vadd.f32 0.0, %v1344
        %v1346 = vpop.f32.mrf.mxu0
        %1347 = vmatprep.mubr.bf16.mxu0 0
        %1348 = vmatmul.mubr.bf16.gmra.mxu0 %v703
        %v1349 = vpop.f32.mrf.mxu0
        %v1350 = vadd.f32 0.0, %v1349
        %v1351 = vpop.f32.mrf.mxu0
        %v1352 = vpop.f32.mrf.mxu0
        %v1353 = vadd.f32 0.0, %v1352
        %v1354 = vpop.f32.mrf.mxu0
        %1355 = vmatprep.mubr.bf16.mxu0 0
        %1356 = vmatmul.mubr.bf16.gmra.mxu0 %v706
        %v1357 = vpop.f32.mrf.mxu0
        %v1358 = vadd.f32 0.0, %v1357
        %v1359 = vpop.f32.mrf.mxu0
        %v1360 = vpop.f32.mrf.mxu0
        %v1361 = vadd.f32 0.0, %v1360
        %v1362 = vpop.f32.mrf.mxu0
        %1363 = vmatprep.mubr.bf16.mxu0 0
        %1364 = vmatmul.mubr.bf16.gmra.mxu0 %v709
        %v1365 = vpop.f32.mrf.mxu0
        %v1366 = vadd.f32 0.0, %v1365
        %v1367 = vpop.f32.mrf.mxu0
        %v1368 = vpop.f32.mrf.mxu0
        %v1369 = vadd.f32 0.0, %v1368
        %v1370 = vpop.f32.mrf.mxu0
        %1371 = vmatprep.mubr.bf16.mxu0 0
        %1372 = vmatmul.mubr.bf16.gmra.mxu0 %v712
        %v1373 = vpop.f32.mrf.mxu0
        %v1374 = vadd.f32 0.0, %v1373
        %v1375 = vpop.f32.mrf.mxu0
        %v1376 = vpop.f32.mrf.mxu0
        %v1377 = vadd.f32 0.0, %v1376
        %v1378 = vpop.f32.mrf.mxu0
        %1379 = vmatprep.mubr.bf16.mxu0 0
        %1380 = vmatmul.mubr.bf16.gmra.mxu0 %v715
        %v1381 = vpop.f32.mrf.mxu0
        %v1382 = vadd.f32 0.0, %v1381
        %v1383 = vpop.f32.mrf.mxu0
        %v1384 = vpop.f32.mrf.mxu0
        %v1385 = vadd.f32 0.0, %v1384
        %v1386 = vpop.f32.mrf.mxu0
        %1387 = vmatprep.mubr.bf16.mxu0 0
        %1388 = vmatmul.mubr.bf16.gmra.mxu0 %v718
        %v1389 = vpop.f32.mrf.mxu0
        %v1390 = vadd.f32 0.0, %v1389
        %v1391 = vpop.f32.mrf.mxu0
        %v1392 = vpop.f32.mrf.mxu0
        %v1393 = vadd.f32 0.0, %v1392
        %v1394 = vpop.f32.mrf.mxu0
        %1395 = vmatprep.mubr.bf16.mxu0 0
        %1396 = vmatmul.mubr.bf16.gmra.mxu0 %v721
        %v1397 = vpop.f32.mrf.mxu0
        %v1398 = vadd.f32 0.0, %v1397
        %v1399 = vpop.f32.mrf.mxu0
        %v1400 = vpop.f32.mrf.mxu0
        %v1401 = vadd.f32 0.0, %v1400
        %v1402 = vpop.f32.mrf.mxu0
        %1403 = vmatprep.mubr.bf16.mxu0 0
        %1404 = vmatmul.mubr.bf16.gmra.mxu0 %v724
        %v1405 = vpop.f32.mrf.mxu0
        %v1406 = vadd.f32 0.0, %v1405
        %v1407 = vpop.f32.mrf.mxu0
        %v1408 = vpop.f32.mrf.mxu0
        %v1409 = vadd.f32 0.0, %v1408
        %v1410 = vpop.f32.mrf.mxu0
        %1411 = vmatprep.mubr.bf16.mxu0 0
        %1412 = vmatmul.mubr.bf16.gmra.mxu0 %v727
        %v1413 = vpop.f32.mrf.mxu0
        %v1414 = vadd.f32 0.0, %v1413
        %v1415 = vpop.f32.mrf.mxu0
        %v1416 = vpop.f32.mrf.mxu0
        %v1417 = vadd.f32 0.0, %v1416
        %v1418 = vpop.f32.mrf.mxu0
        %1419 = vmatprep.mubr.bf16.mxu0 0
        %1420 = vmatmul.mubr.bf16.gmra.mxu0 %v730
        %v1421 = vpop.f32.mrf.mxu0
        %v1422 = vadd.f32 0.0, %v1421
        %v1423 = vpop.f32.mrf.mxu0
        %v1424 = vpop.f32.mrf.mxu0
        %v1425 = vadd.f32 0.0, %v1424
        %v1426 = vpop.f32.mrf.mxu0
        %1427 = vmatprep.mubr.bf16.mxu0 0
        %1428 = vmatmul.mubr.bf16.gmra.mxu0 %v733
        %v1429 = vpop.f32.mrf.mxu0
        %v1430 = vadd.f32 0.0, %v1429
        %v1431 = vpop.f32.mrf.mxu0
        %v1432 = vpop.f32.mrf.mxu0
        %v1433 = vadd.f32 0.0, %v1432
        %v1434 = vpop.f32.mrf.mxu0
        %1435 = vmatprep.mubr.bf16.mxu0 0
        %1436 = vmatmul.mubr.bf16.gmra.mxu0 %v1278
        %v1437 = vpop.f32.mrf.mxu0
        %v1438 = vadd.f32 0.0, %v1437
        %v1439 = vpop.f32.mrf.mxu0
        %v1440 = vpop.f32.mrf.mxu0
        %v1441 = vadd.f32 0.0, %v1440
        %v1442 = vpop.f32.mrf.mxu0
        %1443 = vdwg.mxu0
        %v1444 = vadd.f32 %v1242, %v1318
        %v1445 = vadd.f32 %v1243, %v1321
        %v1446 = vadd.f32 %v1244, %v1326
        %v1447 = vadd.f32 %v1245, %v1329
        %v1448 = vadd.f32 %v1246, %v1334
        %v1449 = vadd.f32 %v1247, %v1337
        %v1450 = vadd.f32 %v1248, %v1342
        %v1451 = vadd.f32 %v1249, %v1345
        %v1452 = vadd.f32 %v1250, %v1350
        %v1453 = vadd.f32 %v1251, %v1353
        %v1454 = vadd.f32 %v1252, %v1358
        %v1455 = vadd.f32 %v1253, %v1361
        %v1456 = vadd.f32 %v1254, %v1366
        %v1457 = vadd.f32 %v1255, %v1369
        %v1458 = vadd.f32 %v1256, %v1374
        %v1459 = vadd.f32 %v1257, %v1377
        %v1460 = vadd.f32 %v1258, %v1382
        %v1461 = vadd.f32 %v1259, %v1385
        %v1462 = vadd.f32 %v1260, %v1390
        %v1463 = vadd.f32 %v1261, %v1393
        %v1464 = vadd.f32 %v1262, %v1398
        %v1465 = vadd.f32 %v1263, %v1401
        %v1466 = vadd.f32 %v1264, %v1406
        %v1467 = vadd.f32 %v1265, %v1409
        %v1468 = vadd.f32 %v1266, %v1414
        %v1469 = vadd.f32 %v1267, %v1417
        %v1470 = vadd.f32 %v1268, %v1422
        %v1471 = vadd.f32 %v1269, %v1425
        %v1472 = vadd.f32 %v1270, %v1430
        %v1473 = vadd.f32 %v1271, %v1433
        %v1474 = vadd.f32 %v1272, %v1438
        %v1475 = vadd.f32 %v1273, %v1441
        %v1479 = vrot.slane %v271, 1
        %v1480 = vrot.slane %v272, 1
        %v1481 = vsel %vm342, %v1479, %v1480
        %v1482 = vrot.slane %v273, 1
        %v1483 = vsel %vm342, %v1480, %v1482
        %v1486 = vpack.c.bf16 %v1483, %v1481
        %s1487 = scalar_lea.vmem %s1, 8
        %v1488 = vld [vmem:[%s1487] sm:$0x3]
        %v1490 = vsel %vm473, %v1486, 0
        %v1493 = vsel %vm522, %v1488, 0
        %1495 = vmatprep.subr.bf16.mxu0 0
        %1496 = vmatpush1.bf16.msra.mxu0 0
        %1497 = vmatprep.subr.bf16.mxu0 0
        %1498 = vmatpush1.bf16.msra.mxu0 0
        %1499 = vmatprep.subr.bf16.mxu0 0
        %1500 = vmatpush1.bf16.msra.mxu0 0
        %1501 = vmatprep.subr.bf16.mxu0 0
        %1502 = vmatpush1.bf16.msra.mxu0 0
        %1503 = vmatprep.subr.bf16.mxu0 0
        %1504 = vmatpush1.bf16.msra.mxu0 0
        %1505 = vmatprep.subr.bf16.mxu0 0
        %1506 = vmatpush1.bf16.msra.mxu0 0
        %1507 = vmatprep.subr.bf16.mxu0 0
        %1508 = vmatpush1.bf16.msra.mxu0 0
        %1509 = vmatprep.subr.bf16.mxu0 0
        %1510 = vmatpush1.bf16.msra.mxu0 %v1493
        %1511 = vmatprep.subr.bf16.mxu0 0
        %1512 = vmatpush2.bf16.msra.mxu0 0
        %1513 = vmatprep.subr.bf16.mxu0 0
        %1514 = vmatpush2.bf16.msra.mxu0 0
        %1515 = vmatprep.subr.bf16.mxu0 0
        %1516 = vmatpush2.bf16.msra.mxu0 0
        %1517 = vmatprep.subr.bf16.mxu0 0
        %1518 = vmatpush2.bf16.msra.mxu0 0
        %1519 = vmatprep.subr.bf16.mxu0 0
        %1520 = vmatpush2.bf16.msra.mxu0 0
        %1521 = vmatprep.subr.bf16.mxu0 0
        %1522 = vmatpush2.bf16.msra.mxu0 0
        %1523 = vmatprep.subr.bf16.mxu0 0
        %1524 = vmatpush2.bf16.msra.mxu0 0
        %1525 = vmatprep.subr.bf16.mxu0 0
        %1526 = vmatpush2.bf16.msra.mxu0 0
        %1527 = vmatprep.mubr.bf16.mxu0 0
        %1528 = vmatmul.mubr.bf16.gmra.mxu0 %v478
        %v1529 = vpop.f32.mrf.mxu0
        %v1530 = vadd.f32 0.0, %v1529
        %v1531 = vpop.f32.mrf.mxu0
        %v1532 = vpop.f32.mrf.mxu0
        %v1533 = vadd.f32 0.0, %v1532
        %v1534 = vpop.f32.mrf.mxu0
        %1535 = vmatprep.mubr.bf16.mxu0 0
        %1536 = vmatmul.mubr.bf16.gmra.mxu0 %v481
        %v1537 = vpop.f32.mrf.mxu0
        %v1538 = vadd.f32 0.0, %v1537
        %v1539 = vpop.f32.mrf.mxu0
        %v1540 = vpop.f32.mrf.mxu0
        %v1541 = vadd.f32 0.0, %v1540
        %v1542 = vpop.f32.mrf.mxu0
        %1543 = vmatprep.mubr.bf16.mxu0 0
        %1544 = vmatmul.mubr.bf16.gmra.mxu0 %v484
        %v1545 = vpop.f32.mrf.mxu0
        %v1546 = vadd.f32 0.0, %v1545
        %v1547 = vpop.f32.mrf.mxu0
        %v1548 = vpop.f32.mrf.mxu0
        %v1549 = vadd.f32 0.0, %v1548
        %v1550 = vpop.f32.mrf.mxu0
        %1551 = vmatprep.mubr.bf16.mxu0 0
        %1552 = vmatmul.mubr.bf16.gmra.mxu0 %v487
        %v1553 = vpop.f32.mrf.mxu0
        %v1554 = vadd.f32 0.0, %v1553
        %v1555 = vpop.f32.mrf.mxu0
        %v1556 = vpop.f32.mrf.mxu0
        %v1557 = vadd.f32 0.0, %v1556
        %v1558 = vpop.f32.mrf.mxu0
        %1559 = vmatprep.mubr.bf16.mxu0 0
        %1560 = vmatmul.mubr.bf16.gmra.mxu0 %v490
        %v1561 = vpop.f32.mrf.mxu0
        %v1562 = vadd.f32 0.0, %v1561
        %v1563 = vpop.f32.mrf.mxu0
        %v1564 = vpop.f32.mrf.mxu0
        %v1565 = vadd.f32 0.0, %v1564
        %v1566 = vpop.f32.mrf.mxu0
        %1567 = vmatprep.mubr.bf16.mxu0 0
        %1568 = vmatmul.mubr.bf16.gmra.mxu0 %v493
        %v1569 = vpop.f32.mrf.mxu0
        %v1570 = vadd.f32 0.0, %v1569
        %v1571 = vpop.f32.mrf.mxu0
        %v1572 = vpop.f32.mrf.mxu0
        %v1573 = vadd.f32 0.0, %v1572
        %v1574 = vpop.f32.mrf.mxu0
        %1575 = vmatprep.mubr.bf16.mxu0 0
        %1576 = vmatmul.mubr.bf16.gmra.mxu0 %v496
        %v1577 = vpop.f32.mrf.mxu0
        %v1578 = vadd.f32 0.0, %v1577
        %v1579 = vpop.f32.mrf.mxu0
        %v1580 = vpop.f32.mrf.mxu0
        %v1581 = vadd.f32 0.0, %v1580
        %v1582 = vpop.f32.mrf.mxu0
        %1583 = vmatprep.mubr.bf16.mxu0 0
        %1584 = vmatmul.mubr.bf16.gmra.mxu0 %v499
        %v1585 = vpop.f32.mrf.mxu0
        %v1586 = vadd.f32 0.0, %v1585
        %v1587 = vpop.f32.mrf.mxu0
        %v1588 = vpop.f32.mrf.mxu0
        %v1589 = vadd.f32 0.0, %v1588
        %v1590 = vpop.f32.mrf.mxu0
        %1591 = vmatprep.mubr.bf16.mxu0 0
        %1592 = vmatmul.mubr.bf16.gmra.mxu0 %v502
        %v1593 = vpop.f32.mrf.mxu0
        %v1594 = vadd.f32 0.0, %v1593
        %v1595 = vpop.f32.mrf.mxu0
        %v1596 = vpop.f32.mrf.mxu0
        %v1597 = vadd.f32 0.0, %v1596
        %v1598 = vpop.f32.mrf.mxu0
        %1599 = vmatprep.mubr.bf16.mxu0 0
        %1600 = vmatmul.mubr.bf16.gmra.mxu0 %v505
        %v1601 = vpop.f32.mrf.mxu0
        %v1602 = vadd.f32 0.0, %v1601
        %v1603 = vpop.f32.mrf.mxu0
        %v1604 = vpop.f32.mrf.mxu0
        %v1605 = vadd.f32 0.0, %v1604
        %v1606 = vpop.f32.mrf.mxu0
        %1607 = vmatprep.mubr.bf16.mxu0 0
        %1608 = vmatmul.mubr.bf16.gmra.mxu0 %v508
        %v1609 = vpop.f32.mrf.mxu0
        %v1610 = vadd.f32 0.0, %v1609
        %v1611 = vpop.f32.mrf.mxu0
        %v1612 = vpop.f32.mrf.mxu0
        %v1613 = vadd.f32 0.0, %v1612
        %v1614 = vpop.f32.mrf.mxu0
        %1615 = vmatprep.mubr.bf16.mxu0 0
        %1616 = vmatmul.mubr.bf16.gmra.mxu0 %v511
        %v1617 = vpop.f32.mrf.mxu0
        %v1618 = vadd.f32 0.0, %v1617
        %v1619 = vpop.f32.mrf.mxu0
        %v1620 = vpop.f32.mrf.mxu0
        %v1621 = vadd.f32 0.0, %v1620
        %v1622 = vpop.f32.mrf.mxu0
        %1623 = vmatprep.mubr.bf16.mxu0 0
        %1624 = vmatmul.mubr.bf16.gmra.mxu0 %v514
        %v1625 = vpop.f32.mrf.mxu0
        %v1626 = vadd.f32 0.0, %v1625
        %v1627 = vpop.f32.mrf.mxu0
        %v1628 = vpop.f32.mrf.mxu0
        %v1629 = vadd.f32 0.0, %v1628
        %v1630 = vpop.f32.mrf.mxu0
        %1631 = vmatprep.mubr.bf16.mxu0 0
        %1632 = vmatmul.mubr.bf16.gmra.mxu0 %v517
        %v1633 = vpop.f32.mrf.mxu0
        %v1634 = vadd.f32 0.0, %v1633
        %v1635 = vpop.f32.mrf.mxu0
        %v1636 = vpop.f32.mrf.mxu0
        %v1637 = vadd.f32 0.0, %v1636
        %v1638 = vpop.f32.mrf.mxu0
        %1639 = vmatprep.mubr.bf16.mxu0 0
        %1640 = vmatmul.mubr.bf16.gmra.mxu0 %v520
        %v1641 = vpop.f32.mrf.mxu0
        %v1642 = vadd.f32 0.0, %v1641
        %v1643 = vpop.f32.mrf.mxu0
        %v1644 = vpop.f32.mrf.mxu0
        %v1645 = vadd.f32 0.0, %v1644
        %v1646 = vpop.f32.mrf.mxu0
        %1647 = vmatprep.mubr.bf16.mxu0 0
        %1648 = vmatmul.mubr.bf16.gmra.mxu0 %v1490
        %v1649 = vpop.f32.mrf.mxu0
        %v1650 = vadd.f32 0.0, %v1649
        %v1651 = vpop.f32.mrf.mxu0
        %v1652 = vpop.f32.mrf.mxu0
        %v1653 = vadd.f32 0.0, %v1652
        %v1654 = vpop.f32.mrf.mxu0
        %1655 = vdwg.mxu0
        %v1656 = vadd.f32 %v1444, %v1530
        %v1657 = vadd.f32 %v1445, %v1533
        %v1658 = vadd.f32 %v1446, %v1538
        %v1659 = vadd.f32 %v1447, %v1541
        %v1660 = vadd.f32 %v1448, %v1546
        %v1661 = vadd.f32 %v1449, %v1549
        %v1662 = vadd.f32 %v1450, %v1554
        %v1663 = vadd.f32 %v1451, %v1557
        %v1664 = vadd.f32 %v1452, %v1562
        %v1665 = vadd.f32 %v1453, %v1565
        %v1666 = vadd.f32 %v1454, %v1570
        %v1667 = vadd.f32 %v1455, %v1573
        %v1668 = vadd.f32 %v1456, %v1578
        %v1669 = vadd.f32 %v1457, %v1581
        %v1670 = vadd.f32 %v1458, %v1586
        %v1671 = vadd.f32 %v1459, %v1589
        %v1672 = vadd.f32 %v1460, %v1594
        %v1673 = vadd.f32 %v1461, %v1597
        %v1674 = vadd.f32 %v1462, %v1602
        %v1675 = vadd.f32 %v1463, %v1605
        %v1676 = vadd.f32 %v1464, %v1610
        %v1677 = vadd.f32 %v1465, %v1613
        %v1678 = vadd.f32 %v1466, %v1618
        %v1679 = vadd.f32 %v1467, %v1621
        %v1680 = vadd.f32 %v1468, %v1626
        %v1681 = vadd.f32 %v1469, %v1629
        %v1682 = vadd.f32 %v1470, %v1634
        %v1683 = vadd.f32 %v1471, %v1637
        %v1684 = vadd.f32 %v1472, %v1642
        %v1685 = vadd.f32 %v1473, %v1645
        %v1686 = vadd.f32 %v1474, %v1650
        %v1687 = vadd.f32 %v1475, %v1653
        %v1688 = vrot.slane %v271, 2
        %v1689 = vrot.slane %v272, 2
        %v1690 = vsel %vm899, %v1688, %v1689
        %v1691 = vrot.slane %v273, 2
        %v1692 = vsel %vm899, %v1689, %v1691
        %v1695 = vpack.c.bf16 %v1692, %v1690
        %s1696 = scalar_lea.vmem %s1, 10
        %v1697 = vld [vmem:[%s1696] sm:$0x3]
        %v1699 = vsel %vm473, %v1695, 0
        %v1702 = vsel %vm522, %v1697, 0
        %1704 = vmatprep.subr.bf16.mxu0 0
        %1705 = vmatpush1.bf16.msra.mxu0 0
        %1706 = vmatprep.subr.bf16.mxu0 0
        %1707 = vmatpush1.bf16.msra.mxu0 0
        %1708 = vmatprep.subr.bf16.mxu0 0
        %1709 = vmatpush1.bf16.msra.mxu0 0
        %1710 = vmatprep.subr.bf16.mxu0 0
        %1711 = vmatpush1.bf16.msra.mxu0 0
        %1712 = vmatprep.subr.bf16.mxu0 0
        %1713 = vmatpush1.bf16.msra.mxu0 0
        %1714 = vmatprep.subr.bf16.mxu0 0
        %1715 = vmatpush1.bf16.msra.mxu0 0
        %1716 = vmatprep.subr.bf16.mxu0 0
        %1717 = vmatpush1.bf16.msra.mxu0 0
        %1718 = vmatprep.subr.bf16.mxu0 0
        %1719 = vmatpush1.bf16.msra.mxu0 %v1702
        %1720 = vmatprep.subr.bf16.mxu0 0
        %1721 = vmatpush2.bf16.msra.mxu0 0
        %1722 = vmatprep.subr.bf16.mxu0 0
        %1723 = vmatpush2.bf16.msra.mxu0 0
        %1724 = vmatprep.subr.bf16.mxu0 0
        %1725 = vmatpush2.bf16.msra.mxu0 0
        %1726 = vmatprep.subr.bf16.mxu0 0
        %1727 = vmatpush2.bf16.msra.mxu0 0
        %1728 = vmatprep.subr.bf16.mxu0 0
        %1729 = vmatpush2.bf16.msra.mxu0 0
        %1730 = vmatprep.subr.bf16.mxu0 0
        %1731 = vmatpush2.bf16.msra.mxu0 0
        %1732 = vmatprep.subr.bf16.mxu0 0
        %1733 = vmatpush2.bf16.msra.mxu0 0
        %1734 = vmatprep.subr.bf16.mxu0 0
        %1735 = vmatpush2.bf16.msra.mxu0 0
        %1736 = vmatprep.mubr.bf16.mxu0 0
        %1737 = vmatmul.mubr.bf16.gmra.mxu0 %v1034
        %v1738 = vpop.f32.mrf.mxu0
        %v1739 = vadd.f32 0.0, %v1738
        %v1740 = vpop.f32.mrf.mxu0
        %v1741 = vpop.f32.mrf.mxu0
        %v1742 = vadd.f32 0.0, %v1741
        %v1743 = vpop.f32.mrf.mxu0
        %1744 = vmatprep.mubr.bf16.mxu0 0
        %1745 = vmatmul.mubr.bf16.gmra.mxu0 %v1037
        %v1746 = vpop.f32.mrf.mxu0
        %v1747 = vadd.f32 0.0, %v1746
        %v1748 = vpop.f32.mrf.mxu0
        %v1749 = vpop.f32.mrf.mxu0
        %v1750 = vadd.f32 0.0, %v1749
        %v1751 = vpop.f32.mrf.mxu0
        %1752 = vmatprep.mubr.bf16.mxu0 0
        %1753 = vmatmul.mubr.bf16.gmra.mxu0 %v1040
        %v1754 = vpop.f32.mrf.mxu0
        %v1755 = vadd.f32 0.0, %v1754
        %v1756 = vpop.f32.mrf.mxu0
        %v1757 = vpop.f32.mrf.mxu0
        %v1758 = vadd.f32 0.0, %v1757
        %v1759 = vpop.f32.mrf.mxu0
        %1760 = vmatprep.mubr.bf16.mxu0 0
        %1761 = vmatmul.mubr.bf16.gmra.mxu0 %v1043
        %v1762 = vpop.f32.mrf.mxu0
        %v1763 = vadd.f32 0.0, %v1762
        %v1764 = vpop.f32.mrf.mxu0
        %v1765 = vpop.f32.mrf.mxu0
        %v1766 = vadd.f32 0.0, %v1765
        %v1767 = vpop.f32.mrf.mxu0
        %1768 = vmatprep.mubr.bf16.mxu0 0
        %1769 = vmatmul.mubr.bf16.gmra.mxu0 %v1046
        %v1770 = vpop.f32.mrf.mxu0
        %v1771 = vadd.f32 0.0, %v1770
        %v1772 = vpop.f32.mrf.mxu0
        %v1773 = vpop.f32.mrf.mxu0
        %v1774 = vadd.f32 0.0, %v1773
        %v1775 = vpop.f32.mrf.mxu0
        %1776 = vmatprep.mubr.bf16.mxu0 0
        %1777 = vmatmul.mubr.bf16.gmra.mxu0 %v1049
        %v1778 = vpop.f32.mrf.mxu0
        %v1779 = vadd.f32 0.0, %v1778
        %v1780 = vpop.f32.mrf.mxu0
        %v1781 = vpop.f32.mrf.mxu0
        %v1782 = vadd.f32 0.0, %v1781
        %v1783 = vpop.f32.mrf.mxu0
        %1784 = vmatprep.mubr.bf16.mxu0 0
        %1785 = vmatmul.mubr.bf16.gmra.mxu0 %v1052
        %v1786 = vpop.f32.mrf.mxu0
        %v1787 = vadd.f32 0.0, %v1786
        %v1788 = vpop.f32.mrf.mxu0
        %v1789 = vpop.f32.mrf.mxu0
        %v1790 = vadd.f32 0.0, %v1789
        %v1791 = vpop.f32.mrf.mxu0
        %1792 = vmatprep.mubr.bf16.mxu0 0
        %1793 = vmatmul.mubr.bf16.gmra.mxu0 %v1055
        %v1794 = vpop.f32.mrf.mxu0
        %v1795 = vadd.f32 0.0, %v1794
        %v1796 = vpop.f32.mrf.mxu0
        %v1797 = vpop.f32.mrf.mxu0
        %v1798 = vadd.f32 0.0, %v1797
        %v1799 = vpop.f32.mrf.mxu0
        %1800 = vmatprep.mubr.bf16.mxu0 0
        %1801 = vmatmul.mubr.bf16.gmra.mxu0 %v1058
        %v1802 = vpop.f32.mrf.mxu0
        %v1803 = vadd.f32 0.0, %v1802
        %v1804 = vpop.f32.mrf.mxu0
        %v1805 = vpop.f32.mrf.mxu0
        %v1806 = vadd.f32 0.0, %v1805
        %v1807 = vpop.f32.mrf.mxu0
        %1808 = vmatprep.mubr.bf16.mxu0 0
        %1809 = vmatmul.mubr.bf16.gmra.mxu0 %v1061
        %v1810 = vpop.f32.mrf.mxu0
        %v1811 = vadd.f32 0.0, %v1810
        %v1812 = vpop.f32.mrf.mxu0
        %v1813 = vpop.f32.mrf.mxu0
        %v1814 = vadd.f32 0.0, %v1813
        %v1815 = vpop.f32.mrf.mxu0
        %1816 = vmatprep.mubr.bf16.mxu0 0
        %1817 = vmatmul.mubr.bf16.gmra.mxu0 %v1064
        %v1818 = vpop.f32.mrf.mxu0
        %v1819 = vadd.f32 0.0, %v1818
        %v1820 = vpop.f32.mrf.mxu0
        %v1821 = vpop.f32.mrf.mxu0
        %v1822 = vadd.f32 0.0, %v1821
        %v1823 = vpop.f32.mrf.mxu0
        %1824 = vmatprep.mubr.bf16.mxu0 0
        %1825 = vmatmul.mubr.bf16.gmra.mxu0 %v1067
        %v1826 = vpop.f32.mrf.mxu0
        %v1827 = vadd.f32 0.0, %v1826
        %v1828 = vpop.f32.mrf.mxu0
        %v1829 = vpop.f32.mrf.mxu0
        %v1830 = vadd.f32 0.0, %v1829
        %v1831 = vpop.f32.mrf.mxu0
        %1832 = vmatprep.mubr.bf16.mxu0 0
        %1833 = vmatmul.mubr.bf16.gmra.mxu0 %v1070
        %v1834 = vpop.f32.mrf.mxu0
        %v1835 = vadd.f32 0.0, %v1834
        %v1836 = vpop.f32.mrf.mxu0
        %v1837 = vpop.f32.mrf.mxu0
        %v1838 = vadd.f32 0.0, %v1837
        %v1839 = vpop.f32.mrf.mxu0
        %1840 = vmatprep.mubr.bf16.mxu0 0
        %1841 = vmatmul.mubr.bf16.gmra.mxu0 %v1073
        %v1842 = vpop.f32.mrf.mxu0
        %v1843 = vadd.f32 0.0, %v1842
        %v1844 = vpop.f32.mrf.mxu0
        %v1845 = vpop.f32.mrf.mxu0
        %v1846 = vadd.f32 0.0, %v1845
        %v1847 = vpop.f32.mrf.mxu0
        %1848 = vmatprep.mubr.bf16.mxu0 0
        %1849 = vmatmul.mubr.bf16.gmra.mxu0 %v1076
        %v1850 = vpop.f32.mrf.mxu0
        %v1851 = vadd.f32 0.0, %v1850
        %v1852 = vpop.f32.mrf.mxu0
        %v1853 = vpop.f32.mrf.mxu0
        %v1854 = vadd.f32 0.0, %v1853
        %v1855 = vpop.f32.mrf.mxu0
        %1856 = vmatprep.mubr.bf16.mxu0 0
        %1857 = vmatmul.mubr.bf16.gmra.mxu0 %v1699
        %v1858 = vpop.f32.mrf.mxu0
        %v1859 = vadd.f32 0.0, %v1858
        %v1860 = vpop.f32.mrf.mxu0
        %v1861 = vpop.f32.mrf.mxu0
        %v1862 = vadd.f32 0.0, %v1861
        %v1863 = vpop.f32.mrf.mxu0
        %1864 = vdwg.mxu0
        %v1865 = vadd.f32 %v1656, %v1739
        %v1866 = vadd.f32 %v1657, %v1742
        %v1867 = vadd.f32 %v1658, %v1747
        %v1868 = vadd.f32 %v1659, %v1750
        %v1869 = vadd.f32 %v1660, %v1755
        %v1870 = vadd.f32 %v1661, %v1758
        %v1871 = vadd.f32 %v1662, %v1763
        %v1872 = vadd.f32 %v1663, %v1766
        %v1873 = vadd.f32 %v1664, %v1771
        %v1874 = vadd.f32 %v1665, %v1774
        %v1875 = vadd.f32 %v1666, %v1779
        %v1876 = vadd.f32 %v1667, %v1782
        %v1877 = vadd.f32 %v1668, %v1787
        %v1878 = vadd.f32 %v1669, %v1790
        %v1879 = vadd.f32 %v1670, %v1795
        %v1880 = vadd.f32 %v1671, %v1798
        %v1881 = vadd.f32 %v1672, %v1803
        %v1882 = vadd.f32 %v1673, %v1806
        %v1883 = vadd.f32 %v1674, %v1811
        %v1884 = vadd.f32 %v1675, %v1814
        %v1885 = vadd.f32 %v1676, %v1819
        %v1886 = vadd.f32 %v1677, %v1822
        %v1887 = vadd.f32 %v1678, %v1827
        %v1888 = vadd.f32 %v1679, %v1830
        %v1889 = vadd.f32 %v1680, %v1835
        %v1890 = vadd.f32 %v1681, %v1838
        %v1891 = vadd.f32 %v1682, %v1843
        %v1892 = vadd.f32 %v1683, %v1846
        %v1893 = vadd.f32 %v1684, %v1851
        %v1894 = vadd.f32 %v1685, %v1854
        %v1895 = vadd.f32 %v1686, %v1859
        %v1896 = vadd.f32 %v1687, %v1862
        %v1897 = vpack.c.bf16 %v275, %v274
        %s1898 = scalar_lea.vmem %s1, 12
        %v1899 = vld [vmem:[%s1898] sm:$0x3]
        %v1901 = vsel %vm473, %v1897, 0
        %v1904 = vsel %vm522, %v1899, 0
        %1906 = vmatprep.subr.bf16.mxu0 0
        %1907 = vmatpush1.bf16.msra.mxu0 0
        %1908 = vmatprep.subr.bf16.mxu0 0
        %1909 = vmatpush1.bf16.msra.mxu0 0
        %1910 = vmatprep.subr.bf16.mxu0 0
        %1911 = vmatpush1.bf16.msra.mxu0 0
        %1912 = vmatprep.subr.bf16.mxu0 0
        %1913 = vmatpush1.bf16.msra.mxu0 0
        %1914 = vmatprep.subr.bf16.mxu0 0
        %1915 = vmatpush1.bf16.msra.mxu0 0
        %1916 = vmatprep.subr.bf16.mxu0 0
        %1917 = vmatpush1.bf16.msra.mxu0 0
        %1918 = vmatprep.subr.bf16.mxu0 0
        %1919 = vmatpush1.bf16.msra.mxu0 0
        %1920 = vmatprep.subr.bf16.mxu0 0
        %1921 = vmatpush1.bf16.msra.mxu0 %v1904
        %1922 = vmatprep.subr.bf16.mxu0 0
        %1923 = vmatpush2.bf16.msra.mxu0 0
        %1924 = vmatprep.subr.bf16.mxu0 0
        %1925 = vmatpush2.bf16.msra.mxu0 0
        %1926 = vmatprep.subr.bf16.mxu0 0
        %1927 = vmatpush2.bf16.msra.mxu0 0
        %1928 = vmatprep.subr.bf16.mxu0 0
        %1929 = vmatpush2.bf16.msra.mxu0 0
        %1930 = vmatprep.subr.bf16.mxu0 0
        %1931 = vmatpush2.bf16.msra.mxu0 0
        %1932 = vmatprep.subr.bf16.mxu0 0
        %1933 = vmatpush2.bf16.msra.mxu0 0
        %1934 = vmatprep.subr.bf16.mxu0 0
        %1935 = vmatpush2.bf16.msra.mxu0 0
        %1936 = vmatprep.subr.bf16.mxu0 0
        %1937 = vmatpush2.bf16.msra.mxu0 0
        %1938 = vmatprep.mubr.bf16.mxu0 0
        %1939 = vmatmul.mubr.bf16.gmra.mxu0 %v694
        %v1940 = vpop.f32.mrf.mxu0
        %v1941 = vadd.f32 0.0, %v1940
        %v1942 = vpop.f32.mrf.mxu0
        %v1943 = vpop.f32.mrf.mxu0
        %v1944 = vadd.f32 0.0, %v1943
        %v1945 = vpop.f32.mrf.mxu0
        %1946 = vmatprep.mubr.bf16.mxu0 0
        %1947 = vmatmul.mubr.bf16.gmra.mxu0 %v697
        %v1948 = vpop.f32.mrf.mxu0
        %v1949 = vadd.f32 0.0, %v1948
        %v1950 = vpop.f32.mrf.mxu0
        %v1951 = vpop.f32.mrf.mxu0
        %v1952 = vadd.f32 0.0, %v1951
        %v1953 = vpop.f32.mrf.mxu0
        %1954 = vmatprep.mubr.bf16.mxu0 0
        %1955 = vmatmul.mubr.bf16.gmra.mxu0 %v700
        %v1956 = vpop.f32.mrf.mxu0
        %v1957 = vadd.f32 0.0, %v1956
        %v1958 = vpop.f32.mrf.mxu0
        %v1959 = vpop.f32.mrf.mxu0
        %v1960 = vadd.f32 0.0, %v1959
        %v1961 = vpop.f32.mrf.mxu0
        %1962 = vmatprep.mubr.bf16.mxu0 0
        %1963 = vmatmul.mubr.bf16.gmra.mxu0 %v703
        %v1964 = vpop.f32.mrf.mxu0
        %v1965 = vadd.f32 0.0, %v1964
        %v1966 = vpop.f32.mrf.mxu0
        %v1967 = vpop.f32.mrf.mxu0
        %v1968 = vadd.f32 0.0, %v1967
        %v1969 = vpop.f32.mrf.mxu0
        %1970 = vmatprep.mubr.bf16.mxu0 0
        %1971 = vmatmul.mubr.bf16.gmra.mxu0 %v706
        %v1972 = vpop.f32.mrf.mxu0
        %v1973 = vadd.f32 0.0, %v1972
        %v1974 = vpop.f32.mrf.mxu0
        %v1975 = vpop.f32.mrf.mxu0
        %v1976 = vadd.f32 0.0, %v1975
        %v1977 = vpop.f32.mrf.mxu0
        %1978 = vmatprep.mubr.bf16.mxu0 0
        %1979 = vmatmul.mubr.bf16.gmra.mxu0 %v709
        %v1980 = vpop.f32.mrf.mxu0
        %v1981 = vadd.f32 0.0, %v1980
        %v1982 = vpop.f32.mrf.mxu0
        %v1983 = vpop.f32.mrf.mxu0
        %v1984 = vadd.f32 0.0, %v1983
        %v1985 = vpop.f32.mrf.mxu0
        %1986 = vmatprep.mubr.bf16.mxu0 0
        %1987 = vmatmul.mubr.bf16.gmra.mxu0 %v712
        %v1988 = vpop.f32.mrf.mxu0
        %v1989 = vadd.f32 0.0, %v1988
        %v1990 = vpop.f32.mrf.mxu0
        %v1991 = vpop.f32.mrf.mxu0
        %v1992 = vadd.f32 0.0, %v1991
        %v1993 = vpop.f32.mrf.mxu0
        %1994 = vmatprep.mubr.bf16.mxu0 0
        %1995 = vmatmul.mubr.bf16.gmra.mxu0 %v715
        %v1996 = vpop.f32.mrf.mxu0
        %v1997 = vadd.f32 0.0, %v1996
        %v1998 = vpop.f32.mrf.mxu0
        %v1999 = vpop.f32.mrf.mxu0
        %v2000 = vadd.f32 0.0, %v1999
        %v2001 = vpop.f32.mrf.mxu0
        %2002 = vmatprep.mubr.bf16.mxu0 0
        %2003 = vmatmul.mubr.bf16.gmra.mxu0 %v718
        %v2004 = vpop.f32.mrf.mxu0
        %v2005 = vadd.f32 0.0, %v2004
        %v2006 = vpop.f32.mrf.mxu0
        %v2007 = vpop.f32.mrf.mxu0
        %v2008 = vadd.f32 0.0, %v2007
        %v2009 = vpop.f32.mrf.mxu0
        %2010 = vmatprep.mubr.bf16.mxu0 0
        %2011 = vmatmul.mubr.bf16.gmra.mxu0 %v721
        %v2012 = vpop.f32.mrf.mxu0
        %v2013 = vadd.f32 0.0, %v2012
        %v2014 = vpop.f32.mrf.mxu0
        %v2015 = vpop.f32.mrf.mxu0
        %v2016 = vadd.f32 0.0, %v2015
        %v2017 = vpop.f32.mrf.mxu0
        %2018 = vmatprep.mubr.bf16.mxu0 0
        %2019 = vmatmul.mubr.bf16.gmra.mxu0 %v724
        %v2020 = vpop.f32.mrf.mxu0
        %v2021 = vadd.f32 0.0, %v2020
        %v2022 = vpop.f32.mrf.mxu0
        %v2023 = vpop.f32.mrf.mxu0
        %v2024 = vadd.f32 0.0, %v2023
        %v2025 = vpop.f32.mrf.mxu0
        %2026 = vmatprep.mubr.bf16.mxu0 0
        %2027 = vmatmul.mubr.bf16.gmra.mxu0 %v727
        %v2028 = vpop.f32.mrf.mxu0
        %v2029 = vadd.f32 0.0, %v2028
        %v2030 = vpop.f32.mrf.mxu0
        %v2031 = vpop.f32.mrf.mxu0
        %v2032 = vadd.f32 0.0, %v2031
        %v2033 = vpop.f32.mrf.mxu0
        %2034 = vmatprep.mubr.bf16.mxu0 0
        %2035 = vmatmul.mubr.bf16.gmra.mxu0 %v730
        %v2036 = vpop.f32.mrf.mxu0
        %v2037 = vadd.f32 0.0, %v2036
        %v2038 = vpop.f32.mrf.mxu0
        %v2039 = vpop.f32.mrf.mxu0
        %v2040 = vadd.f32 0.0, %v2039
        %v2041 = vpop.f32.mrf.mxu0
        %2042 = vmatprep.mubr.bf16.mxu0 0
        %2043 = vmatmul.mubr.bf16.gmra.mxu0 %v733
        %v2044 = vpop.f32.mrf.mxu0
        %v2045 = vadd.f32 0.0, %v2044
        %v2046 = vpop.f32.mrf.mxu0
        %v2047 = vpop.f32.mrf.mxu0
        %v2048 = vadd.f32 0.0, %v2047
        %v2049 = vpop.f32.mrf.mxu0
        %2050 = vmatprep.mubr.bf16.mxu0 0
        %2051 = vmatmul.mubr.bf16.gmra.mxu0 %v1278
        %v2052 = vpop.f32.mrf.mxu0
        %v2053 = vadd.f32 0.0, %v2052
        %v2054 = vpop.f32.mrf.mxu0
        %v2055 = vpop.f32.mrf.mxu0
        %v2056 = vadd.f32 0.0, %v2055
        %v2057 = vpop.f32.mrf.mxu0
        %2058 = vmatprep.mubr.bf16.mxu0 0
        %2059 = vmatmul.mubr.bf16.gmra.mxu0 %v1901
        %v2060 = vpop.f32.mrf.mxu0
        %v2061 = vadd.f32 0.0, %v2060
        %v2062 = vpop.f32.mrf.mxu0
        %v2063 = vpop.f32.mrf.mxu0
        %v2064 = vadd.f32 0.0, %v2063
        %v2065 = vpop.f32.mrf.mxu0
        %2066 = vdwg.mxu0
        %v2067 = vadd.f32 %v1865, %v1941
        %v2068 = vadd.f32 %v1866, %v1944
        %v2069 = vadd.f32 %v1867, %v1949
        %v2070 = vadd.f32 %v1868, %v1952
        %v2071 = vadd.f32 %v1869, %v1957
        %v2072 = vadd.f32 %v1870, %v1960
        %v2073 = vadd.f32 %v1871, %v1965
        %v2074 = vadd.f32 %v1872, %v1968
        %v2075 = vadd.f32 %v1873, %v1973
        %v2076 = vadd.f32 %v1874, %v1976
        %v2077 = vadd.f32 %v1875, %v1981
        %v2078 = vadd.f32 %v1876, %v1984
        %v2079 = vadd.f32 %v1877, %v1989
        %v2080 = vadd.f32 %v1878, %v1992
        %v2081 = vadd.f32 %v1879, %v1997
        %v2082 = vadd.f32 %v1880, %v2000
        %v2083 = vadd.f32 %v1881, %v2005
        %v2084 = vadd.f32 %v1882, %v2008
        %v2085 = vadd.f32 %v1883, %v2013
        %v2086 = vadd.f32 %v1884, %v2016
        %v2087 = vadd.f32 %v1885, %v2021
        %v2088 = vadd.f32 %v1886, %v2024
        %v2089 = vadd.f32 %v1887, %v2029
        %v2090 = vadd.f32 %v1888, %v2032
        %v2091 = vadd.f32 %v1889, %v2037
        %v2092 = vadd.f32 %v1890, %v2040
        %v2093 = vadd.f32 %v1891, %v2045
        %v2094 = vadd.f32 %v1892, %v2048
        %v2095 = vadd.f32 %v1893, %v2053
        %v2096 = vadd.f32 %v1894, %v2056
        %v2097 = vadd.f32 %v1895, %v2061
        %v2098 = vadd.f32 %v1896, %v2064
        %v2102 = vrot.slane %v274, 1
        %v2103 = vrot.slane %v275, 1
        %v2104 = vsel %vm342, %v2102, %v2103
        %v2105 = vrot.slane %v276, 1
        %v2106 = vsel %vm342, %v2103, %v2105
        %v2109 = vpack.c.bf16 %v2106, %v2104
        %s2110 = scalar_lea.vmem %s1, 14
        %v2111 = vld [vmem:[%s2110] sm:$0x3]
        %v2113 = vsel %vm473, %v2109, 0
        %v2116 = vsel %vm522, %v2111, 0
        %2118 = vmatprep.subr.bf16.mxu0 0
        %2119 = vmatpush1.bf16.msra.mxu0 0
        %2120 = vmatprep.subr.bf16.mxu0 0
        %2121 = vmatpush1.bf16.msra.mxu0 0
        %2122 = vmatprep.subr.bf16.mxu0 0
        %2123 = vmatpush1.bf16.msra.mxu0 0
        %2124 = vmatprep.subr.bf16.mxu0 0
        %2125 = vmatpush1.bf16.msra.mxu0 0
        %2126 = vmatprep.subr.bf16.mxu0 0
        %2127 = vmatpush1.bf16.msra.mxu0 0
        %2128 = vmatprep.subr.bf16.mxu0 0
        %2129 = vmatpush1.bf16.msra.mxu0 0
        %2130 = vmatprep.subr.bf16.mxu0 0
        %2131 = vmatpush1.bf16.msra.mxu0 0
        %2132 = vmatprep.subr.bf16.mxu0 0
        %2133 = vmatpush1.bf16.msra.mxu0 %v2116
        %2134 = vmatprep.subr.bf16.mxu0 0
        %2135 = vmatpush2.bf16.msra.mxu0 0
        %2136 = vmatprep.subr.bf16.mxu0 0
        %2137 = vmatpush2.bf16.msra.mxu0 0
        %2138 = vmatprep.subr.bf16.mxu0 0
        %2139 = vmatpush2.bf16.msra.mxu0 0
        %2140 = vmatprep.subr.bf16.mxu0 0
        %2141 = vmatpush2.bf16.msra.mxu0 0
        %2142 = vmatprep.subr.bf16.mxu0 0
        %2143 = vmatpush2.bf16.msra.mxu0 0
        %2144 = vmatprep.subr.bf16.mxu0 0
        %2145 = vmatpush2.bf16.msra.mxu0 0
        %2146 = vmatprep.subr.bf16.mxu0 0
        %2147 = vmatpush2.bf16.msra.mxu0 0
        %2148 = vmatprep.subr.bf16.mxu0 0
        %2149 = vmatpush2.bf16.msra.mxu0 0
        %2150 = vmatprep.mubr.bf16.mxu0 0
        %2151 = vmatmul.mubr.bf16.gmra.mxu0 %v481
        %v2152 = vpop.f32.mrf.mxu0
        %v2153 = vadd.f32 0.0, %v2152
        %v2154 = vpop.f32.mrf.mxu0
        %v2155 = vpop.f32.mrf.mxu0
        %v2156 = vadd.f32 0.0, %v2155
        %v2157 = vpop.f32.mrf.mxu0
        %2158 = vmatprep.mubr.bf16.mxu0 0
        %2159 = vmatmul.mubr.bf16.gmra.mxu0 %v484
        %v2160 = vpop.f32.mrf.mxu0
        %v2161 = vadd.f32 0.0, %v2160
        %v2162 = vpop.f32.mrf.mxu0
        %v2163 = vpop.f32.mrf.mxu0
        %v2164 = vadd.f32 0.0, %v2163
        %v2165 = vpop.f32.mrf.mxu0
        %2166 = vmatprep.mubr.bf16.mxu0 0
        %2167 = vmatmul.mubr.bf16.gmra.mxu0 %v487
        %v2168 = vpop.f32.mrf.mxu0
        %v2169 = vadd.f32 0.0, %v2168
        %v2170 = vpop.f32.mrf.mxu0
        %v2171 = vpop.f32.mrf.mxu0
        %v2172 = vadd.f32 0.0, %v2171
        %v2173 = vpop.f32.mrf.mxu0
        %2174 = vmatprep.mubr.bf16.mxu0 0
        %2175 = vmatmul.mubr.bf16.gmra.mxu0 %v490
        %v2176 = vpop.f32.mrf.mxu0
        %v2177 = vadd.f32 0.0, %v2176
        %v2178 = vpop.f32.mrf.mxu0
        %v2179 = vpop.f32.mrf.mxu0
        %v2180 = vadd.f32 0.0, %v2179
        %v2181 = vpop.f32.mrf.mxu0
        %2182 = vmatprep.mubr.bf16.mxu0 0
        %2183 = vmatmul.mubr.bf16.gmra.mxu0 %v493
        %v2184 = vpop.f32.mrf.mxu0
        %v2185 = vadd.f32 0.0, %v2184
        %v2186 = vpop.f32.mrf.mxu0
        %v2187 = vpop.f32.mrf.mxu0
        %v2188 = vadd.f32 0.0, %v2187
        %v2189 = vpop.f32.mrf.mxu0
        %2190 = vmatprep.mubr.bf16.mxu0 0
        %2191 = vmatmul.mubr.bf16.gmra.mxu0 %v496
        %v2192 = vpop.f32.mrf.mxu0
        %v2193 = vadd.f32 0.0, %v2192
        %v2194 = vpop.f32.mrf.mxu0
        %v2195 = vpop.f32.mrf.mxu0
        %v2196 = vadd.f32 0.0, %v2195
        %v2197 = vpop.f32.mrf.mxu0
        %2198 = vmatprep.mubr.bf16.mxu0 0
        %2199 = vmatmul.mubr.bf16.gmra.mxu0 %v499
        %v2200 = vpop.f32.mrf.mxu0
        %v2201 = vadd.f32 0.0, %v2200
        %v2202 = vpop.f32.mrf.mxu0
        %v2203 = vpop.f32.mrf.mxu0
        %v2204 = vadd.f32 0.0, %v2203
        %v2205 = vpop.f32.mrf.mxu0
        %2206 = vmatprep.mubr.bf16.mxu0 0
        %2207 = vmatmul.mubr.bf16.gmra.mxu0 %v502
        %v2208 = vpop.f32.mrf.mxu0
        %v2209 = vadd.f32 0.0, %v2208
        %v2210 = vpop.f32.mrf.mxu0
        %v2211 = vpop.f32.mrf.mxu0
        %v2212 = vadd.f32 0.0, %v2211
        %v2213 = vpop.f32.mrf.mxu0
        %2214 = vmatprep.mubr.bf16.mxu0 0
        %2215 = vmatmul.mubr.bf16.gmra.mxu0 %v505
        %v2216 = vpop.f32.mrf.mxu0
        %v2217 = vadd.f32 0.0, %v2216
        %v2218 = vpop.f32.mrf.mxu0
        %v2219 = vpop.f32.mrf.mxu0
        %v2220 = vadd.f32 0.0, %v2219
        %v2221 = vpop.f32.mrf.mxu0
        %2222 = vmatprep.mubr.bf16.mxu0 0
        %2223 = vmatmul.mubr.bf16.gmra.mxu0 %v508
        %v2224 = vpop.f32.mrf.mxu0
        %v2225 = vadd.f32 0.0, %v2224
        %v2226 = vpop.f32.mrf.mxu0
        %v2227 = vpop.f32.mrf.mxu0
        %v2228 = vadd.f32 0.0, %v2227
        %v2229 = vpop.f32.mrf.mxu0
        %2230 = vmatprep.mubr.bf16.mxu0 0
        %2231 = vmatmul.mubr.bf16.gmra.mxu0 %v511
        %v2232 = vpop.f32.mrf.mxu0
        %v2233 = vadd.f32 0.0, %v2232
        %v2234 = vpop.f32.mrf.mxu0
        %v2235 = vpop.f32.mrf.mxu0
        %v2236 = vadd.f32 0.0, %v2235
        %v2237 = vpop.f32.mrf.mxu0
        %2238 = vmatprep.mubr.bf16.mxu0 0
        %2239 = vmatmul.mubr.bf16.gmra.mxu0 %v514
        %v2240 = vpop.f32.mrf.mxu0
        %v2241 = vadd.f32 0.0, %v2240
        %v2242 = vpop.f32.mrf.mxu0
        %v2243 = vpop.f32.mrf.mxu0
        %v2244 = vadd.f32 0.0, %v2243
        %v2245 = vpop.f32.mrf.mxu0
        %2246 = vmatprep.mubr.bf16.mxu0 0
        %2247 = vmatmul.mubr.bf16.gmra.mxu0 %v517
        %v2248 = vpop.f32.mrf.mxu0
        %v2249 = vadd.f32 0.0, %v2248
        %v2250 = vpop.f32.mrf.mxu0
        %v2251 = vpop.f32.mrf.mxu0
        %v2252 = vadd.f32 0.0, %v2251
        %v2253 = vpop.f32.mrf.mxu0
        %2254 = vmatprep.mubr.bf16.mxu0 0
        %2255 = vmatmul.mubr.bf16.gmra.mxu0 %v520
        %v2256 = vpop.f32.mrf.mxu0
        %v2257 = vadd.f32 0.0, %v2256
        %v2258 = vpop.f32.mrf.mxu0
        %v2259 = vpop.f32.mrf.mxu0
        %v2260 = vadd.f32 0.0, %v2259
        %v2261 = vpop.f32.mrf.mxu0
        %2262 = vmatprep.mubr.bf16.mxu0 0
        %2263 = vmatmul.mubr.bf16.gmra.mxu0 %v1490
        %v2264 = vpop.f32.mrf.mxu0
        %v2265 = vadd.f32 0.0, %v2264
        %v2266 = vpop.f32.mrf.mxu0
        %v2267 = vpop.f32.mrf.mxu0
        %v2268 = vadd.f32 0.0, %v2267
        %v2269 = vpop.f32.mrf.mxu0
        %2270 = vmatprep.mubr.bf16.mxu0 0
        %2271 = vmatmul.mubr.bf16.gmra.mxu0 %v2113
        %v2272 = vpop.f32.mrf.mxu0
        %v2273 = vadd.f32 0.0, %v2272
        %v2274 = vpop.f32.mrf.mxu0
        %v2275 = vpop.f32.mrf.mxu0
        %v2276 = vadd.f32 0.0, %v2275
        %v2277 = vpop.f32.mrf.mxu0
        %2278 = vdwg.mxu0
        %v2279 = vadd.f32 %v2067, %v2153
        %v2280 = vadd.f32 %v2068, %v2156
        %v2281 = vadd.f32 %v2069, %v2161
        %v2282 = vadd.f32 %v2070, %v2164
        %v2283 = vadd.f32 %v2071, %v2169
        %v2284 = vadd.f32 %v2072, %v2172
        %v2285 = vadd.f32 %v2073, %v2177
        %v2286 = vadd.f32 %v2074, %v2180
        %v2287 = vadd.f32 %v2075, %v2185
        %v2288 = vadd.f32 %v2076, %v2188
        %v2289 = vadd.f32 %v2077, %v2193
        %v2290 = vadd.f32 %v2078, %v2196
        %v2291 = vadd.f32 %v2079, %v2201
        %v2292 = vadd.f32 %v2080, %v2204
        %v2293 = vadd.f32 %v2081, %v2209
        %v2294 = vadd.f32 %v2082, %v2212
        %v2295 = vadd.f32 %v2083, %v2217
        %v2296 = vadd.f32 %v2084, %v2220
        %v2297 = vadd.f32 %v2085, %v2225
        %v2298 = vadd.f32 %v2086, %v2228
        %v2299 = vadd.f32 %v2087, %v2233
        %v2300 = vadd.f32 %v2088, %v2236
        %v2301 = vadd.f32 %v2089, %v2241
        %v2302 = vadd.f32 %v2090, %v2244
        %v2303 = vadd.f32 %v2091, %v2249
        %v2304 = vadd.f32 %v2092, %v2252
        %v2305 = vadd.f32 %v2093, %v2257
        %v2306 = vadd.f32 %v2094, %v2260
        %v2307 = vadd.f32 %v2095, %v2265
        %v2308 = vadd.f32 %v2096, %v2268
        %v2309 = vadd.f32 %v2097, %v2273
        %v2310 = vadd.f32 %v2098, %v2276
        %v2311 = vrot.slane %v274, 2
        %v2312 = vrot.slane %v275, 2
        %v2313 = vsel %vm899, %v2311, %v2312
        %v2314 = vrot.slane %v276, 2
        %v2315 = vsel %vm899, %v2312, %v2314
        %v2318 = vpack.c.bf16 %v2315, %v2313
        %s2319 = scalar_lea.vmem %s1, 16
        %v2320 = vld [vmem:[%s2319] sm:$0x3]
        %v2322 = vsel %vm473, %v2318, 0
        %v2325 = vsel %vm522, %v2320, 0
        %2327 = vmatprep.subr.bf16.mxu0 0
        %2328 = vmatpush1.bf16.msra.mxu0 0
        %2329 = vmatprep.subr.bf16.mxu0 0
        %2330 = vmatpush1.bf16.msra.mxu0 0
        %2331 = vmatprep.subr.bf16.mxu0 0
        %2332 = vmatpush1.bf16.msra.mxu0 0
        %2333 = vmatprep.subr.bf16.mxu0 0
        %2334 = vmatpush1.bf16.msra.mxu0 0
        %2335 = vmatprep.subr.bf16.mxu0 0
        %2336 = vmatpush1.bf16.msra.mxu0 0
        %2337 = vmatprep.subr.bf16.mxu0 0
        %2338 = vmatpush1.bf16.msra.mxu0 0
        %2339 = vmatprep.subr.bf16.mxu0 0
        %2340 = vmatpush1.bf16.msra.mxu0 0
        %2341 = vmatprep.subr.bf16.mxu0 0
        %2342 = vmatpush1.bf16.msra.mxu0 %v2325
        %2343 = vmatprep.subr.bf16.mxu0 0
        %2344 = vmatpush2.bf16.msra.mxu0 0
        %2345 = vmatprep.subr.bf16.mxu0 0
        %2346 = vmatpush2.bf16.msra.mxu0 0
        %2347 = vmatprep.subr.bf16.mxu0 0
        %2348 = vmatpush2.bf16.msra.mxu0 0
        %2349 = vmatprep.subr.bf16.mxu0 0
        %2350 = vmatpush2.bf16.msra.mxu0 0
        %2351 = vmatprep.subr.bf16.mxu0 0
        %2352 = vmatpush2.bf16.msra.mxu0 0
        %2353 = vmatprep.subr.bf16.mxu0 0
        %2354 = vmatpush2.bf16.msra.mxu0 0
        %2355 = vmatprep.subr.bf16.mxu0 0
        %2356 = vmatpush2.bf16.msra.mxu0 0
        %2357 = vmatprep.subr.bf16.mxu0 0
        %2358 = vmatpush2.bf16.msra.mxu0 0
        %2359 = vmatprep.mubr.bf16.mxu0 0
        %2360 = vmatmul.mubr.bf16.gmra.mxu0 %v1037
        %v2361 = vpop.f32.mrf.mxu0
        %v2362 = vadd.f32 0.0, %v2361
        %v2363 = vpop.f32.mrf.mxu0
        %v2364 = vpop.f32.mrf.mxu0
        %v2365 = vadd.f32 0.0, %v2364
        %v2366 = vpop.f32.mrf.mxu0
        %2367 = vmatprep.mubr.bf16.mxu0 0
        %2368 = vmatmul.mubr.bf16.gmra.mxu0 %v1040
        %v2369 = vpop.f32.mrf.mxu0
        %v2370 = vadd.f32 0.0, %v2369
        %v2371 = vpop.f32.mrf.mxu0
        %v2372 = vpop.f32.mrf.mxu0
        %v2373 = vadd.f32 0.0, %v2372
        %v2374 = vpop.f32.mrf.mxu0
        %2375 = vmatprep.mubr.bf16.mxu0 0
        %2376 = vmatmul.mubr.bf16.gmra.mxu0 %v1043
        %v2377 = vpop.f32.mrf.mxu0
        %v2378 = vadd.f32 0.0, %v2377
        %v2379 = vpop.f32.mrf.mxu0
        %v2380 = vpop.f32.mrf.mxu0
        %v2381 = vadd.f32 0.0, %v2380
        %v2382 = vpop.f32.mrf.mxu0
        %2383 = vmatprep.mubr.bf16.mxu0 0
        %2384 = vmatmul.mubr.bf16.gmra.mxu0 %v1046
        %v2385 = vpop.f32.mrf.mxu0
        %v2386 = vadd.f32 0.0, %v2385
        %v2387 = vpop.f32.mrf.mxu0
        %v2388 = vpop.f32.mrf.mxu0
        %v2389 = vadd.f32 0.0, %v2388
        %v2390 = vpop.f32.mrf.mxu0
        %2391 = vmatprep.mubr.bf16.mxu0 0
        %2392 = vmatmul.mubr.bf16.gmra.mxu0 %v1049
        %v2393 = vpop.f32.mrf.mxu0
        %v2394 = vadd.f32 0.0, %v2393
        %v2395 = vpop.f32.mrf.mxu0
        %v2396 = vpop.f32.mrf.mxu0
        %v2397 = vadd.f32 0.0, %v2396
        %v2398 = vpop.f32.mrf.mxu0
        %2399 = vmatprep.mubr.bf16.mxu0 0
        %2400 = vmatmul.mubr.bf16.gmra.mxu0 %v1052
        %v2401 = vpop.f32.mrf.mxu0
        %v2402 = vadd.f32 0.0, %v2401
        %v2403 = vpop.f32.mrf.mxu0
        %v2404 = vpop.f32.mrf.mxu0
        %v2405 = vadd.f32 0.0, %v2404
        %v2406 = vpop.f32.mrf.mxu0
        %2407 = vmatprep.mubr.bf16.mxu0 0
        %2408 = vmatmul.mubr.bf16.gmra.mxu0 %v1055
        %v2409 = vpop.f32.mrf.mxu0
        %v2410 = vadd.f32 0.0, %v2409
        %v2411 = vpop.f32.mrf.mxu0
        %v2412 = vpop.f32.mrf.mxu0
        %v2413 = vadd.f32 0.0, %v2412
        %v2414 = vpop.f32.mrf.mxu0
        %2415 = vmatprep.mubr.bf16.mxu0 0
        %2416 = vmatmul.mubr.bf16.gmra.mxu0 %v1058
        %v2417 = vpop.f32.mrf.mxu0
        %v2418 = vadd.f32 0.0, %v2417
        %v2419 = vpop.f32.mrf.mxu0
        %v2420 = vpop.f32.mrf.mxu0
        %v2421 = vadd.f32 0.0, %v2420
        %v2422 = vpop.f32.mrf.mxu0
        %2423 = vmatprep.mubr.bf16.mxu0 0
        %2424 = vmatmul.mubr.bf16.gmra.mxu0 %v1061
        %v2425 = vpop.f32.mrf.mxu0
        %v2426 = vadd.f32 0.0, %v2425
        %v2427 = vpop.f32.mrf.mxu0
        %v2428 = vpop.f32.mrf.mxu0
        %v2429 = vadd.f32 0.0, %v2428
        %v2430 = vpop.f32.mrf.mxu0
        %2431 = vmatprep.mubr.bf16.mxu0 0
        %2432 = vmatmul.mubr.bf16.gmra.mxu0 %v1064
        %v2433 = vpop.f32.mrf.mxu0
        %v2434 = vadd.f32 0.0, %v2433
        %v2435 = vpop.f32.mrf.mxu0
        %v2436 = vpop.f32.mrf.mxu0
        %v2437 = vadd.f32 0.0, %v2436
        %v2438 = vpop.f32.mrf.mxu0
        %2439 = vmatprep.mubr.bf16.mxu0 0
        %2440 = vmatmul.mubr.bf16.gmra.mxu0 %v1067
        %v2441 = vpop.f32.mrf.mxu0
        %v2442 = vadd.f32 0.0, %v2441
        %v2443 = vpop.f32.mrf.mxu0
        %v2444 = vpop.f32.mrf.mxu0
        %v2445 = vadd.f32 0.0, %v2444
        %v2446 = vpop.f32.mrf.mxu0
        %2447 = vmatprep.mubr.bf16.mxu0 0
        %2448 = vmatmul.mubr.bf16.gmra.mxu0 %v1070
        %v2449 = vpop.f32.mrf.mxu0
        %v2450 = vadd.f32 0.0, %v2449
        %v2451 = vpop.f32.mrf.mxu0
        %v2452 = vpop.f32.mrf.mxu0
        %v2453 = vadd.f32 0.0, %v2452
        %v2454 = vpop.f32.mrf.mxu0
        %2455 = vmatprep.mubr.bf16.mxu0 0
        %2456 = vmatmul.mubr.bf16.gmra.mxu0 %v1073
        %v2457 = vpop.f32.mrf.mxu0
        %v2458 = vadd.f32 0.0, %v2457
        %v2459 = vpop.f32.mrf.mxu0
        %v2460 = vpop.f32.mrf.mxu0
        %v2461 = vadd.f32 0.0, %v2460
        %v2462 = vpop.f32.mrf.mxu0
        %2463 = vmatprep.mubr.bf16.mxu0 0
        %2464 = vmatmul.mubr.bf16.gmra.mxu0 %v1076
        %v2465 = vpop.f32.mrf.mxu0
        %v2466 = vadd.f32 0.0, %v2465
        %v2467 = vpop.f32.mrf.mxu0
        %v2468 = vpop.f32.mrf.mxu0
        %v2469 = vadd.f32 0.0, %v2468
        %v2470 = vpop.f32.mrf.mxu0
        %2471 = vmatprep.mubr.bf16.mxu0 0
        %2472 = vmatmul.mubr.bf16.gmra.mxu0 %v1699
        %v2473 = vpop.f32.mrf.mxu0
        %v2474 = vadd.f32 0.0, %v2473
        %v2475 = vpop.f32.mrf.mxu0
        %v2476 = vpop.f32.mrf.mxu0
        %v2477 = vadd.f32 0.0, %v2476
        %v2478 = vpop.f32.mrf.mxu0
        %2479 = vmatprep.mubr.bf16.mxu0 0
        %2480 = vmatmul.mubr.bf16.gmra.mxu0 %v2322
        %v2481 = vpop.f32.mrf.mxu0
        %v2482 = vadd.f32 0.0, %v2481
        %v2483 = vpop.f32.mrf.mxu0
        %v2484 = vpop.f32.mrf.mxu0
        %v2485 = vadd.f32 0.0, %v2484
        %v2486 = vpop.f32.mrf.mxu0
        %2487 = vdwg.mxu0
        %v2488 = vadd.f32 %v2279, %v2362
        %v2489 = vadd.f32 %v2280, %v2365
        %v2490 = vadd.f32 %v2281, %v2370
        %v2491 = vadd.f32 %v2282, %v2373
        %v2492 = vadd.f32 %v2283, %v2378
        %v2493 = vadd.f32 %v2284, %v2381
        %v2494 = vadd.f32 %v2285, %v2386
        %v2495 = vadd.f32 %v2286, %v2389
        %v2496 = vadd.f32 %v2287, %v2394
        %v2497 = vadd.f32 %v2288, %v2397
        %v2498 = vadd.f32 %v2289, %v2402
        %v2499 = vadd.f32 %v2290, %v2405
        %v2500 = vadd.f32 %v2291, %v2410
        %v2501 = vadd.f32 %v2292, %v2413
        %v2502 = vadd.f32 %v2293, %v2418
        %v2503 = vadd.f32 %v2294, %v2421
        %v2504 = vadd.f32 %v2295, %v2426
        %v2505 = vadd.f32 %v2296, %v2429
        %v2506 = vadd.f32 %v2297, %v2434
        %v2507 = vadd.f32 %v2298, %v2437
        %v2508 = vadd.f32 %v2299, %v2442
        %v2509 = vadd.f32 %v2300, %v2445
        %v2510 = vadd.f32 %v2301, %v2450
        %v2511 = vadd.f32 %v2302, %v2453
        %v2512 = vadd.f32 %v2303, %v2458
        %v2513 = vadd.f32 %v2304, %v2461
        %v2514 = vadd.f32 %v2305, %v2466
        %v2515 = vadd.f32 %v2306, %v2469
        %v2516 = vadd.f32 %v2307, %v2474
        %v2517 = vadd.f32 %v2308, %v2477
        %v2518 = vadd.f32 %v2309, %v2482
        %v2519 = vadd.f32 %v2310, %v2485
        %v2520 = vld [vmem:[%s2] sm:$0x1]
        %v2522 = vlaneseq
        %v2523 = vshrl.u32 %v2522, 7
        %v2524 = vsub.s32 0, %v2523
        %v2525 = vrot.slane %v2520, %v2524
        %v2527 = vadd.f32 %v2488, %v2525
        %v2528 = vadd.f32 %v2489, %v2525
        %v2529 = vadd.f32 %v2490, %v2525
        %v2530 = vadd.f32 %v2491, %v2525
        %v2531 = vadd.f32 %v2492, %v2525
        %v2532 = vadd.f32 %v2493, %v2525
        %v2533 = vadd.f32 %v2494, %v2525
        %v2534 = vadd.f32 %v2495, %v2525
        %v2535 = vadd.f32 %v2496, %v2525
        %v2536 = vadd.f32 %v2497, %v2525
        %v2537 = vadd.f32 %v2498, %v2525
        %v2538 = vadd.f32 %v2499, %v2525
        %v2539 = vadd.f32 %v2500, %v2525
        %v2540 = vadd.f32 %v2501, %v2525
        %v2541 = vadd.f32 %v2502, %v2525
        %v2542 = vadd.f32 %v2503, %v2525
        %v2543 = vadd.f32 %v2504, %v2525
        %v2544 = vadd.f32 %v2505, %v2525
        %v2545 = vadd.f32 %v2506, %v2525
        %v2546 = vadd.f32 %v2507, %v2525
        %v2547 = vadd.f32 %v2508, %v2525
        %v2548 = vadd.f32 %v2509, %v2525
        %v2549 = vadd.f32 %v2510, %v2525
        %v2550 = vadd.f32 %v2511, %v2525
        %v2551 = vadd.f32 %v2512, %v2525
        %v2552 = vadd.f32 %v2513, %v2525
        %v2553 = vadd.f32 %v2514, %v2525
        %v2554 = vadd.f32 %v2515, %v2525
        %v2555 = vadd.f32 %v2516, %v2525
        %v2556 = vadd.f32 %v2517, %v2525
        %v2557 = vadd.f32 %v2518, %v2525
        %v2558 = vadd.f32 %v2519, %v2525
        %v2559 = vmax.f32 %v2527, 0.0
        %v2560 = vmax.f32 %v2528, 0.0
        %v2561 = vmax.f32 %v2529, 0.0
        %v2562 = vmax.f32 %v2530, 0.0
        %v2563 = vmax.f32 %v2531, 0.0
        %v2564 = vmax.f32 %v2532, 0.0
        %v2565 = vmax.f32 %v2533, 0.0
        %v2566 = vmax.f32 %v2534, 0.0
        %v2567 = vmax.f32 %v2535, 0.0
        %v2568 = vmax.f32 %v2536, 0.0
        %v2569 = vmax.f32 %v2537, 0.0
        %v2570 = vmax.f32 %v2538, 0.0
        %v2571 = vmax.f32 %v2539, 0.0
        %v2572 = vmax.f32 %v2540, 0.0
        %v2573 = vmax.f32 %v2541, 0.0
        %v2574 = vmax.f32 %v2542, 0.0
        %v2575 = vmax.f32 %v2543, 0.0
        %v2576 = vmax.f32 %v2544, 0.0
        %v2577 = vmax.f32 %v2545, 0.0
        %v2578 = vmax.f32 %v2546, 0.0
        %v2579 = vmax.f32 %v2547, 0.0
        %v2580 = vmax.f32 %v2548, 0.0
        %v2581 = vmax.f32 %v2549, 0.0
        %v2582 = vmax.f32 %v2550, 0.0
        %v2583 = vmax.f32 %v2551, 0.0
        %v2584 = vmax.f32 %v2552, 0.0
        %v2585 = vmax.f32 %v2553, 0.0
        %v2586 = vmax.f32 %v2554, 0.0
        %v2587 = vmax.f32 %v2555, 0.0
        %v2588 = vmax.f32 %v2556, 0.0
        %v2589 = vmax.f32 %v2557, 0.0
        %v2590 = vmax.f32 %v2558, 0.0
        %v2591 = vpack.c.bf16 %v2560, %v2559
        %v2592 = vpack.c.bf16 %v2562, %v2561
        %v2593 = vpack.c.bf16 %v2564, %v2563
        %v2594 = vpack.c.bf16 %v2566, %v2565
        %v2595 = vpack.c.bf16 %v2568, %v2567
        %v2596 = vpack.c.bf16 %v2570, %v2569
        %v2597 = vpack.c.bf16 %v2572, %v2571
        %v2598 = vpack.c.bf16 %v2574, %v2573
        %v2599 = vpack.c.bf16 %v2576, %v2575
        %v2600 = vpack.c.bf16 %v2578, %v2577
        %v2601 = vpack.c.bf16 %v2580, %v2579
        %v2602 = vpack.c.bf16 %v2582, %v2581
        %v2603 = vpack.c.bf16 %v2584, %v2583
        %v2604 = vpack.c.bf16 %v2586, %v2585
        %v2605 = vpack.c.bf16 %v2588, %v2587
        %v2606 = vpack.c.bf16 %v2590, %v2589
        %v2607 = vld [vmem:[%s3] sm:$0xf]
        %v2608 = vld [vmem:[%s3 + $0x4] sm:$0xf]
        %v2609 = vld [vmem:[%s3 + $0x8] sm:$0xf]
        %v2610 = vld [vmem:[%s3 + $0xc] sm:$0xf]
        %v2611 = vld [vmem:[%s3 + $0x10] sm:$0xf]
        %v2612 = vld [vmem:[%s3 + $0x14] sm:$0xf]
        %v2613 = vld [vmem:[%s3 + $0x18] sm:$0xf]
        %v2614 = vld [vmem:[%s3 + $0x1c] sm:$0xf]
        %v2615 = vld [vmem:[%s3 + $0x20] sm:$0xf]
        %v2616 = vld [vmem:[%s3 + $0x24] sm:$0xf]
        %v2617 = vld [vmem:[%s3 + $0x28] sm:$0xf]
        %v2618 = vld [vmem:[%s3 + $0x2c] sm:$0xf]
        %v2619 = vld [vmem:[%s3 + $0x30] sm:$0xf]
        %v2620 = vld [vmem:[%s3 + $0x34] sm:$0xf]
        %v2621 = vld [vmem:[%s3 + $0x38] sm:$0xf]
        %v2622 = vld [vmem:[%s3 + $0x3c] sm:$0xf]
        %v2639 = vunpack.c.l.b16 %v2607
        %v2640 = vunpack.c.l.b16 %v2608
        %v2641 = vunpack.c.l.b16 %v2609
        %v2642 = vunpack.c.l.b16 %v2610
        %v2643 = vunpack.c.l.b16 %v2611
        %v2644 = vunpack.c.l.b16 %v2612
        %v2645 = vunpack.c.l.b16 %v2613
        %v2646 = vunpack.c.l.b16 %v2614
        %v2647 = vunpack.c.l.b16 %v2615
        %v2648 = vunpack.c.l.b16 %v2616
        %v2649 = vunpack.c.l.b16 %v2617
        %v2650 = vunpack.c.l.b16 %v2618
        %v2651 = vunpack.c.l.b16 %v2619
        %v2652 = vunpack.c.l.b16 %v2620
        %v2653 = vunpack.c.l.b16 %v2621
        %v2654 = vunpack.c.l.b16 %v2622
        %v2655 = vpack.c.b16 %v2640, %v2639
        %v2656 = vpack.c.b16 %v2642, %v2641
        %v2657 = vpack.c.b16 %v2644, %v2643
        %v2658 = vpack.c.b16 %v2646, %v2645
        %v2659 = vpack.c.b16 %v2648, %v2647
        %v2660 = vpack.c.b16 %v2650, %v2649
        %v2661 = vpack.c.b16 %v2652, %v2651
        %v2662 = vpack.c.b16 %v2654, %v2653
        %2671 = vmatprep.subr.bf16.mxu0 0
        %2672 = vmatpush1.bf16.msra.mxu0 %v2662
        %2673 = vmatprep.subr.bf16.mxu0 0
        %2674 = vmatpush1.bf16.msra.mxu0 %v2661
        %2675 = vmatprep.subr.bf16.mxu0 0
        %2676 = vmatpush1.bf16.msra.mxu0 %v2660
        %2677 = vmatprep.subr.bf16.mxu0 0
        %2678 = vmatpush1.bf16.msra.mxu0 %v2659
        %2679 = vmatprep.subr.bf16.mxu0 0
        %2680 = vmatpush1.bf16.msra.mxu0 %v2658
        %2681 = vmatprep.subr.bf16.mxu0 0
        %2682 = vmatpush1.bf16.msra.mxu0 %v2657
        %2683 = vmatprep.subr.bf16.mxu0 0
        %2684 = vmatpush1.bf16.msra.mxu0 %v2656
        %2685 = vmatprep.subr.bf16.mxu0 0
        %2686 = vmatpush1.bf16.msra.mxu0 %v2655
        %2687 = vmatprep.subr.bf16.mxu0 0
        %2688 = vmatpush2.bf16.msra.mxu0 0
        %2689 = vmatprep.subr.bf16.mxu0 0
        %2690 = vmatpush2.bf16.msra.mxu0 0
        %2691 = vmatprep.subr.bf16.mxu0 0
        %2692 = vmatpush2.bf16.msra.mxu0 0
        %2693 = vmatprep.subr.bf16.mxu0 0
        %2694 = vmatpush2.bf16.msra.mxu0 0
        %2695 = vmatprep.subr.bf16.mxu0 0
        %2696 = vmatpush2.bf16.msra.mxu0 0
        %2697 = vmatprep.subr.bf16.mxu0 0
        %2698 = vmatpush2.bf16.msra.mxu0 0
        %2699 = vmatprep.subr.bf16.mxu0 0
        %2700 = vmatpush2.bf16.msra.mxu0 0
        %2701 = vmatprep.subr.bf16.mxu0 0
        %2702 = vmatpush2.bf16.msra.mxu0 0
        %2703 = vmatprep.mubr.bf16.mxu0 0
        %2704 = vmatmul.mubr.bf16.gmra.mxu0 %v2591
        %v2705 = vpop.f32.mrf.mxu0
        %v2706 = vadd.f32 0.0, %v2705
        %v2707 = vpop.f32.mrf.mxu0
        %v2708 = vpop.f32.mrf.mxu0
        %v2709 = vadd.f32 0.0, %v2708
        %v2710 = vpop.f32.mrf.mxu0
        %2711 = vmatprep.mubr.bf16.mxu0 0
        %2712 = vmatmul.mubr.bf16.gmra.mxu0 %v2592
        %v2713 = vpop.f32.mrf.mxu0
        %v2714 = vadd.f32 0.0, %v2713
        %v2715 = vpop.f32.mrf.mxu0
        %v2716 = vpop.f32.mrf.mxu0
        %v2717 = vadd.f32 0.0, %v2716
        %v2718 = vpop.f32.mrf.mxu0
        %2719 = vmatprep.mubr.bf16.mxu0 0
        %2720 = vmatmul.mubr.bf16.gmra.mxu0 %v2593
        %v2721 = vpop.f32.mrf.mxu0
        %v2722 = vadd.f32 0.0, %v2721
        %v2723 = vpop.f32.mrf.mxu0
        %v2724 = vpop.f32.mrf.mxu0
        %v2725 = vadd.f32 0.0, %v2724
        %v2726 = vpop.f32.mrf.mxu0
        %2727 = vmatprep.mubr.bf16.mxu0 0
        %2728 = vmatmul.mubr.bf16.gmra.mxu0 %v2594
        %v2729 = vpop.f32.mrf.mxu0
        %v2730 = vadd.f32 0.0, %v2729
        %v2731 = vpop.f32.mrf.mxu0
        %v2732 = vpop.f32.mrf.mxu0
        %v2733 = vadd.f32 0.0, %v2732
        %v2734 = vpop.f32.mrf.mxu0
        %2735 = vmatprep.mubr.bf16.mxu0 0
        %2736 = vmatmul.mubr.bf16.gmra.mxu0 %v2595
        %v2737 = vpop.f32.mrf.mxu0
        %v2738 = vadd.f32 0.0, %v2737
        %v2739 = vpop.f32.mrf.mxu0
        %v2740 = vpop.f32.mrf.mxu0
        %v2741 = vadd.f32 0.0, %v2740
        %v2742 = vpop.f32.mrf.mxu0
        %2743 = vmatprep.mubr.bf16.mxu0 0
        %2744 = vmatmul.mubr.bf16.gmra.mxu0 %v2596
        %v2745 = vpop.f32.mrf.mxu0
        %v2746 = vadd.f32 0.0, %v2745
        %v2747 = vpop.f32.mrf.mxu0
        %v2748 = vpop.f32.mrf.mxu0
        %v2749 = vadd.f32 0.0, %v2748
        %v2750 = vpop.f32.mrf.mxu0
        %2751 = vmatprep.mubr.bf16.mxu0 0
        %2752 = vmatmul.mubr.bf16.gmra.mxu0 %v2597
        %v2753 = vpop.f32.mrf.mxu0
        %v2754 = vadd.f32 0.0, %v2753
        %v2755 = vpop.f32.mrf.mxu0
        %v2756 = vpop.f32.mrf.mxu0
        %v2757 = vadd.f32 0.0, %v2756
        %v2758 = vpop.f32.mrf.mxu0
        %2759 = vmatprep.mubr.bf16.mxu0 0
        %2760 = vmatmul.mubr.bf16.gmra.mxu0 %v2598
        %v2761 = vpop.f32.mrf.mxu0
        %v2762 = vadd.f32 0.0, %v2761
        %v2763 = vpop.f32.mrf.mxu0
        %v2764 = vpop.f32.mrf.mxu0
        %v2765 = vadd.f32 0.0, %v2764
        %v2766 = vpop.f32.mrf.mxu0
        %2767 = vmatprep.mubr.bf16.mxu0 0
        %2768 = vmatmul.mubr.bf16.gmra.mxu0 %v2599
        %v2769 = vpop.f32.mrf.mxu0
        %v2770 = vadd.f32 0.0, %v2769
        %v2771 = vpop.f32.mrf.mxu0
        %v2772 = vpop.f32.mrf.mxu0
        %v2773 = vadd.f32 0.0, %v2772
        %v2774 = vpop.f32.mrf.mxu0
        %2775 = vmatprep.mubr.bf16.mxu0 0
        %2776 = vmatmul.mubr.bf16.gmra.mxu0 %v2600
        %v2777 = vpop.f32.mrf.mxu0
        %v2778 = vadd.f32 0.0, %v2777
        %v2779 = vpop.f32.mrf.mxu0
        %v2780 = vpop.f32.mrf.mxu0
        %v2781 = vadd.f32 0.0, %v2780
        %v2782 = vpop.f32.mrf.mxu0
        %2783 = vmatprep.mubr.bf16.mxu0 0
        %2784 = vmatmul.mubr.bf16.gmra.mxu0 %v2601
        %v2785 = vpop.f32.mrf.mxu0
        %v2786 = vadd.f32 0.0, %v2785
        %v2787 = vpop.f32.mrf.mxu0
        %v2788 = vpop.f32.mrf.mxu0
        %v2789 = vadd.f32 0.0, %v2788
        %v2790 = vpop.f32.mrf.mxu0
        %2791 = vmatprep.mubr.bf16.mxu0 0
        %2792 = vmatmul.mubr.bf16.gmra.mxu0 %v2602
        %v2793 = vpop.f32.mrf.mxu0
        %v2794 = vadd.f32 0.0, %v2793
        %v2795 = vpop.f32.mrf.mxu0
        %v2796 = vpop.f32.mrf.mxu0
        %v2797 = vadd.f32 0.0, %v2796
        %v2798 = vpop.f32.mrf.mxu0
        %2799 = vmatprep.mubr.bf16.mxu0 0
        %2800 = vmatmul.mubr.bf16.gmra.mxu0 %v2603
        %v2801 = vpop.f32.mrf.mxu0
        %v2802 = vadd.f32 0.0, %v2801
        %v2803 = vpop.f32.mrf.mxu0
        %v2804 = vpop.f32.mrf.mxu0
        %v2805 = vadd.f32 0.0, %v2804
        %v2806 = vpop.f32.mrf.mxu0
        %2807 = vmatprep.mubr.bf16.mxu0 0
        %2808 = vmatmul.mubr.bf16.gmra.mxu0 %v2604
        %v2809 = vpop.f32.mrf.mxu0
        %v2810 = vadd.f32 0.0, %v2809
        %v2811 = vpop.f32.mrf.mxu0
        %v2812 = vpop.f32.mrf.mxu0
        %v2813 = vadd.f32 0.0, %v2812
        %v2814 = vpop.f32.mrf.mxu0
        %2815 = vmatprep.mubr.bf16.mxu0 0
        %2816 = vmatmul.mubr.bf16.gmra.mxu0 %v2605
        %v2817 = vpop.f32.mrf.mxu0
        %v2818 = vadd.f32 0.0, %v2817
        %v2819 = vpop.f32.mrf.mxu0
        %v2820 = vpop.f32.mrf.mxu0
        %v2821 = vadd.f32 0.0, %v2820
        %v2822 = vpop.f32.mrf.mxu0
        %2823 = vmatprep.mubr.bf16.mxu0 0
        %2824 = vmatmul.mubr.bf16.gmra.mxu0 %v2606
        %v2825 = vpop.f32.mrf.mxu0
        %v2826 = vadd.f32 0.0, %v2825
        %v2827 = vpop.f32.mrf.mxu0
        %v2828 = vpop.f32.mrf.mxu0
        %v2829 = vadd.f32 0.0, %v2828
        %v2830 = vpop.f32.mrf.mxu0
        %2831 = vdwg.mxu0
        %v2832 = vadd.f32 %v2706, %v2709
        %v2833 = vadd.f32 %v2832, %v2714
        %v2834 = vadd.f32 %v2833, %v2717
        %v2835 = vadd.f32 %v2834, %v2722
        %v2836 = vadd.f32 %v2835, %v2725
        %v2837 = vadd.f32 %v2836, %v2730
        %v2838 = vadd.f32 %v2837, %v2733
        %v2839 = vadd.f32 %v2838, %v2738
        %v2840 = vadd.f32 %v2839, %v2741
        %v2841 = vadd.f32 %v2840, %v2746
        %v2842 = vadd.f32 %v2841, %v2749
        %v2843 = vadd.f32 %v2842, %v2754
        %v2844 = vadd.f32 %v2843, %v2757
        %v2845 = vadd.f32 %v2844, %v2762
        %v2846 = vadd.f32 %v2845, %v2765
        %v2847 = vadd.f32 %v2846, %v2770
        %v2848 = vadd.f32 %v2847, %v2773
        %v2849 = vadd.f32 %v2848, %v2778
        %v2850 = vadd.f32 %v2849, %v2781
        %v2851 = vadd.f32 %v2850, %v2786
        %v2852 = vadd.f32 %v2851, %v2789
        %v2853 = vadd.f32 %v2852, %v2794
        %v2854 = vadd.f32 %v2853, %v2797
        %v2855 = vadd.f32 %v2854, %v2802
        %v2856 = vadd.f32 %v2855, %v2805
        %v2857 = vadd.f32 %v2856, %v2810
        %v2858 = vadd.f32 %v2857, %v2813
        %v2859 = vadd.f32 %v2858, %v2818
        %v2860 = vadd.f32 %v2859, %v2821
        %v2861 = vadd.f32 %v2860, %v2826
        %v2862 = vadd.f32 %v2861, %v2829
        %v2863 = vrot.slane %v2862, 4
        %v2864 = vadd.f32 %v2862, %v2863
        %v2865 = vrot.slane %v2864, 2
        %v2866 = vadd.f32 %v2864, %v2865
        %v2867 = vrot.slane %v2866, 1
        %v2868 = vadd.f32 %v2866, %v2867
        %v2869 = vmul.f32 %v2868, 0.00390625
        %v2870 = vld [vmem:[%s4] sm:$0x1]
        %v2871 = vadd.f32 %v2869, %v2870
        %2872 = vst [vmem:[%s216] sm:$0x1] %v2871
        %s2873 = sand.u32 %s137, 1
        %s2874 = scalar_lea.sflag [#allocation3], %s2873
        %s2875 = sand.u32 %s137, 1
        %s2876 = scalar_lea.vmem [#allocation2], %s2875
        // Predicated region
        $region41: #{tpu_custom_call.1} parent=39 // pred_check
          %p2877 = pneg %p147
        $region42: #{tpu_custom_call.1} parent=39 // pred_check_branch
          %2879 = sbr.rel (%p2877) target = $region44
        $region43: #{tpu_custom_call.1} parent=39 // pred_region
          %s2881 = ssub.s32 16, 16
          %2882 = vsyncadd %s2874, %s2881
          %s2883 = smul.addr %s19, 16
          %s2884 = scalar_lea.hbm %s5, %s2883
          %s2886 = sshll.u32 %s2876, 4
          %s2887 = int_to_ptr.vmem [resolvable:$true] %s2886
          %2889 = dma.vmem_to_hbm [thread:$0]  %s2887, 16, %s2884, %s2874
        $region44: #{tpu_custom_call.1} parent=39 // pred_fallthru
          _
      $region40: #{tpu_custom_call.1} parent=5 // pred_fallthru
        _
      %p2890 = scmp.le.s32.totalorder 2, %s14
      // Predicated region
      $region45: #{tpu_custom_call.1} parent=5 // pred_check
        %p2891 = pneg %p2890
      $region46: #{tpu_custom_call.1} parent=5 // pred_check_branch
        %2893 = sbr.rel (%p2891) target = $region48
      $region47: #{tpu_custom_call.1} parent=5 // pred_region
        %s2894 = ssub.s32 %s14, 2
        // Predicated region
        $region49: #{tpu_custom_call.1} parent=47 // pred_check
          %p2895 = pneg %p153
        $region50: #{tpu_custom_call.1} parent=47 // pred_check_branch
          %2897 = sbr.rel (%p2895) target = $region52
        $region51: #{tpu_custom_call.1} parent=47 // pred_region
          %s2898 = sand.u32 %s138, 1
          %s2899 = scalar_lea.sflag [#allocation3], %s2898
          %s2900 = sand.u32 %s138, 1
          %s2901 = scalar_lea.vmem [#allocation2], %s2900
          %2902 = dma.done %s2899, 16
        $region52: #{tpu_custom_call.1} parent=47 // pred_fallthru
          _
      $region48: #{tpu_custom_call.1} parent=5 // pred_fallthru
        _
    $region6: #{tpu_custom_call.1} parent=1 // loop_footer
      %s18 = sadd.s32 1, %s14
    $region7: #{tpu_custom_call.1} parent=1 // loop_footer_branch
      %13 = sbr.rel target = $region3
    $region8: #{tpu_custom_call.1} parent=1 // loop_exit
      _
    %2903 = vsyncpa [#allocation3], 1
    %s2904 = scalar_lea.sflag [#allocation3], 1
    %2905 = vsyncpa %s2904, 1

</llo_original>
